<compile_context>
chip_gen: v6e
topology: v6e:2x2x1
jax: 0.10.0
libtpu: 0.0.40
codegen_flags: <defaults>
</compile_context>

<pallas_src>
import numpy as np
import jax
import jax.numpy as jnp
from jax.experimental import pallas as pl
from jax.experimental.pallas import tpu as pltpu

# ----------------------------- problem sizes --------------------------------
B_TOTAL = 256     # total batch (small, but enough to demo the batch grid)
BLOCK_B = 128     # rows per grid step (fills MXU rows)
IN_SIZE = 128     # primal / measurement dimension
OUT_SIZE = 128    # dual (transformed-domain) dimension
M_MASK = 64       # mask block row split  (mask[:m, :r] = 1, mask[m:, r:] = 1)
R_MASK = 64       # mask block col split
NUM_LAYERS = 4    # number of DFBBlock iterations (torch default is 20)
LIP2 = 0.001
BETA = 1.0
LAMBD = 0.1


# ------------------------------- Pallas kernel ------------------------------
def dfbnet_kernel(sigma_ref, tau_ref, lambd_ref, y_ref, m1_ref, wt_ref, out_ref):
    """Fully-unrolled DFBNet forward for one batch block.

    sigma_ref, tau_ref : (NUM_LAYERS,) f32 in SMEM (per-block scalars)
    lambd_ref          : (1,) f32 in SMEM
    y_ref  : (BLOCK_B, IN)      measurements (this grid step's block)
    m1_ref : (2*IN, IN)         stacked [A ; W_eff]  (A = H^T H)
    wt_ref : (IN, OUT)          W_eff.T
    out_ref: (BLOCK_B, IN)      final primal iterate x
    """
    lambd = lambd_ref[0]

    # DFB_first_layer: x = y ; u = L(y) = y @ W_eff^T
    x = y_ref[...]
    u = jnp.dot(x, wt_ref[...], preferred_element_type=jnp.float32)

    # Fully unrolled layer loop (NUM_LAYERS is a Python constant).
    for i in range(NUM_LAYERS):
        sigma = sigma_ref[i]
        tau = tau_ref[i]

        # Primal step, fused: dx = x @ A + u @ W_eff  ==  [x | u] @ [A ; W]
        xu = jnp.concatenate([x, u], axis=-1)                      # (B, 2*IN)
        dx = jnp.dot(xu, m1_ref[...], preferred_element_type=jnp.float32)
        out0 = jnp.clip(x + tau * (y_ref[...] - dx), 0.0, 1.0)

        # Dual step, fused by linearity:
        #   2*sigma*L(out0) - sigma*L(x) = (sigma*(2*out0 - x)) @ W_eff^T
        v = sigma * (2.0 * out0 - x)
        u = jnp.clip(
            jnp.dot(v, wt_ref[...], preferred_element_type=jnp.float32) + u,
            -lambd, lambd)
        x = out0

    out_ref[...] = x


def dfbnet_forward(y, W_eff, A, sigma, tau, lambd, *, block_b=BLOCK_B):
    n_b, in_size = y.shape
    assert n_b % block_b == 0, "batch must be a multiple of the block size"

    # Parameter-setup glue (outside the kernel):
    #   stacked primal operator and the MaskedLinear transpose.
    M1 = jnp.concatenate([A, W_eff], axis=0)            # (2*IN, IN)
    WT = jnp.asarray(W_eff.T)                           # (IN, OUT)
    lambd_arr = jnp.full((1,), lambd, dtype=jnp.float32)

    grid = (n_b // block_b,)
    return pl.pallas_call(
        dfbnet_kernel,
        out_shape=jax.ShapeDtypeStruct((n_b, in_size), jnp.float32),
        grid_spec=pltpu.PrefetchScalarGridSpec(
            num_scalar_prefetch=0,
            grid=grid,
            in_specs=[
                pl.BlockSpec(memory_space=pltpu.MemorySpace.SMEM),   # sigma
                pl.BlockSpec(memory_space=pltpu.MemorySpace.SMEM),   # tau
                pl.BlockSpec(memory_space=pltpu.MemorySpace.SMEM),   # lambd
                pl.BlockSpec((block_b, in_size), lambda i: (i, 0)),  # y block
                pl.BlockSpec((2 * in_size, in_size), lambda i: (0, 0)),  # M1 (resident)
                pl.BlockSpec((in_size, in_size), lambda i: (0, 0)),      # W^T (resident)
            ],
            out_specs=pl.BlockSpec((block_b, in_size), lambda i: (i, 0)),
        ),
        compiler_params=pltpu.CompilerParams(
            dimension_semantics=("parallel",)),   # shards batch blocks across TCs (v7x)
    )(sigma, tau, lambd_arr, y, M1, WT)


# ------------------------------ pure-JAX reference ---------------------------
def dfbnet_reference(y, W_eff, A, sigma, tau, lambd):
    x = y
    u = y @ W_eff.T
    for i in range(NUM_LAYERS):
        s, t = sigma[i], tau[i]
        Dx_1 = x - t * (x @ A)
        Dx_2 = -t * (u @ W_eff)
        bx = t * y
        out0 = jnp.clip(Dx_1 + Dx_2 + bx, 0.0, 1.0)
        out1 = jnp.clip(2.0 * s * (out0 @ W_eff.T) - s * (x @ W_eff.T) + u,
                        -lambd, lambd)
        x, u = out0, out1
    return x


# ----------------------------------- main ------------------------------------
if __name__ == "__main__":
    key = jax.random.PRNGKey(0)
    k_w, k_p, k_h, k_y, k_ls = jax.random.split(key, 5)

    # nn.Linear(in_size, out_size, bias=False) weight, kaiming-uniform-like
    bound = 1.0 / np.sqrt(IN_SIZE)
    weight0 = jax.random.uniform(k_w, (OUT_SIZE, IN_SIZE), jnp.float32,
                                 minval=-bound, maxval=bound)

    # mask[:m, :r] = 1 ; mask[m:, r:] = 1   (MaskedLinear init applies it once)
    mask = jnp.zeros((OUT_SIZE, IN_SIZE), jnp.float32)
    mask = mask.at[:M_MASK, :R_MASK].set(1.0)
    mask = mask.at[M_MASK:, R_MASK:].set(1.0)

    P_star = jax.random.normal(k_p, (IN_SIZE, IN_SIZE), jnp.float32) / np.sqrt(IN_SIZE)

    # effective MaskedLinear weight:  W_eff = (weight * mask) @ P_star
    W_eff = (weight0 * mask) @ P_star

    # H_star_H operator as a symmetric PSD matrix A = H^T H / IN_SIZE
    H = jax.random.normal(k_h, (IN_SIZE, IN_SIZE), jnp.float32)
    A = (H.T @ H) / IN_SIZE

    # per-block log_sigma parameters -> sigma, tau (glue; scalars per layer)
    log_sigma = 0.1 * jax.random.normal(k_ls, (NUM_LAYERS,), jnp.float32)
    sigma = jnp.exp(log_sigma) + 0.05
    tau = 0.99 / (BETA / 2.0 + sigma * LIP2)

    y = jax.random.uniform(k_y, (B_TOTAL, IN_SIZE), jnp.float32)

    out = dfbnet_forward(y, W_eff, A, sigma, tau, LAMBD)
    out = jax.block_until_ready(out)

    ref = dfbnet_reference(y, W_eff, A, sigma, tau, LAMBD)
    np.testing.assert_allclose(np.asarray(out), np.asarray(ref),
                               rtol=1e-4, atol=1e-5)
    print("KERNEL_OK")
</pallas_src>

<mosaic_0001>
module attributes {stable_mosaic.version = 11 : i64} {
  func.func @dfbnet_kernel(%arg0: i32, %arg1: memref<4xf32, #tpu.memory_space<smem>>, %arg2: memref<4xf32, #tpu.memory_space<smem>>, %arg3: memref<1xf32, #tpu.memory_space<smem>>, %arg4: memref<128x128xf32, #tpu.memory_space<vmem>>, %arg5: memref<256x128xf32, #tpu.memory_space<vmem>>, %arg6: memref<128x128xf32, #tpu.memory_space<vmem>>, %arg7: memref<128x128xf32, #tpu.memory_space<vmem>>) attributes {dimension_semantics = [#tpu.dimension_semantics<parallel>], iteration_bounds = array<i64: 2>, scalar_prefetch = 0 : i64, scratch_operands = 0 : i64, tpu.core_type = #tpu.core_type<tc>, window_params = [{transform_indices = @transform_0, window_bounds = array<i64: 4>}, {transform_indices = @transform_1, window_bounds = array<i64: 4>}, {transform_indices = @transform_2, window_bounds = array<i64: 1>}, {transform_indices = @transform_3, window_bounds = array<i64: 128, 128>}, {pipeline_mode = #tpu.pipeline_mode<synchronous>, transform_indices = @transform_4, window_bounds = array<i64: 256, 128>}, {pipeline_mode = #tpu.pipeline_mode<synchronous>, transform_indices = @transform_5, window_bounds = array<i64: 128, 128>}, {transform_indices = @transform_6, window_bounds = array<i64: 128, 128>}]} {
    %c0 = arith.constant 0 : index
    %0 = memref.load %arg3[%c0] : memref<1xf32, #tpu.memory_space<smem>>
    %c0_0 = arith.constant 0 : index
    %c0_1 = arith.constant 0 : index
    %1 = vector.load %arg4[%c0_0, %c0_1] : memref<128x128xf32, #tpu.memory_space<vmem>>, vector<128x128xf32>
    %c0_2 = arith.constant 0 : index
    %c0_3 = arith.constant 0 : index
    %2 = vector.load %arg6[%c0_2, %c0_3] : memref<128x128xf32, #tpu.memory_space<vmem>>, vector<128x128xf32>
    %cst = arith.constant dense<0.000000e+00> : vector<128x128xf32>
    %3 = tpu.matmul %1, %2, %cst {dimension_numbers = #tpu.dot_dimension_numbers<[1], [0], [0], [1], [0, 0, 1, 1], [], []>} : vector<128x128xf32>, vector<128x128xf32>, vector<128x128xf32> -> vector<128x128xf32>
    %c0_4 = arith.constant 0 : index
    %4 = memref.load %arg1[%c0_4] : memref<4xf32, #tpu.memory_space<smem>>
    %c0_5 = arith.constant 0 : index
    %5 = memref.load %arg2[%c0_5] : memref<4xf32, #tpu.memory_space<smem>>
    %6 = tpu.concatenate %1, %3 in 1 : vector<128x128xf32>, vector<128x128xf32> -> vector<128x256xf32>
    %c0_6 = arith.constant 0 : index
    %c0_7 = arith.constant 0 : index
    %7 = vector.load %arg5[%c0_6, %c0_7] : memref<256x128xf32, #tpu.memory_space<vmem>>, vector<256x128xf32>
    %cst_8 = arith.constant dense<0.000000e+00> : vector<128x128xf32>
    %8 = tpu.matmul %6, %7, %cst_8 {dimension_numbers = #tpu.dot_dimension_numbers<[1], [0], [0], [1], [0, 0, 1, 1], [], []>} : vector<128x256xf32>, vector<256x128xf32>, vector<128x128xf32> -> vector<128x128xf32>
    %c0_9 = arith.constant 0 : index
    %c0_10 = arith.constant 0 : index
    %9 = vector.load %arg4[%c0_9, %c0_10] : memref<128x128xf32, #tpu.memory_space<vmem>>, vector<128x128xf32>
    %10 = arith.subf %9, %8 : vector<128x128xf32>
    %11 = vector.broadcast %5 : f32 to vector<128x128xf32>
    %12 = arith.mulf %11, %10 : vector<128x128xf32>
    %13 = arith.addf %1, %12 : vector<128x128xf32>
    %cst_11 = arith.constant 0.000000e+00 : f32
    %cst_12 = arith.constant 1.000000e+00 : f32
    %14 = vector.broadcast %cst_11 : f32 to vector<128x128xf32>
    %15 = arith.maximumf %14, %13 : vector<128x128xf32>
    %16 = vector.broadcast %cst_12 : f32 to vector<128x128xf32>
    %17 = arith.minimumf %16, %15 : vector<128x128xf32>
    %cst_13 = arith.constant 2.000000e+00 : f32
    %18 = vector.broadcast %cst_13 : f32 to vector<128x128xf32>
    %19 = arith.mulf %18, %17 : vector<128x128xf32>
    %20 = arith.subf %19, %1 : vector<128x128xf32>
    %21 = vector.broadcast %4 : f32 to vector<128x128xf32>
    %22 = arith.mulf %21, %20 : vector<128x128xf32>
    %c0_14 = arith.constant 0 : index
    %c0_15 = arith.constant 0 : index
    %23 = vector.load %arg6[%c0_14, %c0_15] : memref<128x128xf32, #tpu.memory_space<vmem>>, vector<128x128xf32>
    %cst_16 = arith.constant dense<0.000000e+00> : vector<128x128xf32>
    %24 = tpu.matmul %22, %23, %cst_16 {dimension_numbers = #tpu.dot_dimension_numbers<[1], [0], [0], [1], [0, 0, 1, 1], [], []>} : vector<128x128xf32>, vector<128x128xf32>, vector<128x128xf32> -> vector<128x128xf32>
    %25 = arith.addf %24, %3 : vector<128x128xf32>
    %cst_17 = arith.constant 0.000000e+00 : f32
    %26 = arith.subf %cst_17, %0 : f32
    %27 = vector.broadcast %26 : f32 to vector<128x128xf32>
    %28 = arith.maximumf %27, %25 : vector<128x128xf32>
    %29 = vector.broadcast %0 : f32 to vector<128x128xf32>
    %30 = arith.minimumf %29, %28 : vector<128x128xf32>
    %c1 = arith.constant 1 : index
    %31 = memref.load %arg1[%c1] : memref<4xf32, #tpu.memory_space<smem>>
    %c1_18 = arith.constant 1 : index
    %32 = memref.load %arg2[%c1_18] : memref<4xf32, #tpu.memory_space<smem>>
    %33 = tpu.concatenate %17, %30 in 1 : vector<128x128xf32>, vector<128x128xf32> -> vector<128x256xf32>
    %c0_19 = arith.constant 0 : index
    %c0_20 = arith.constant 0 : index
    %34 = vector.load %arg5[%c0_19, %c0_20] : memref<256x128xf32, #tpu.memory_space<vmem>>, vector<256x128xf32>
    %cst_21 = arith.constant dense<0.000000e+00> : vector<128x128xf32>
    %35 = tpu.matmul %33, %34, %cst_21 {dimension_numbers = #tpu.dot_dimension_numbers<[1], [0], [0], [1], [0, 0, 1, 1], [], []>} : vector<128x256xf32>, vector<256x128xf32>, vector<128x128xf32> -> vector<128x128xf32>
    %c0_22 = arith.constant 0 : index
    %c0_23 = arith.constant 0 : index
    %36 = vector.load %arg4[%c0_22, %c0_23] : memref<128x128xf32, #tpu.memory_space<vmem>>, vector<128x128xf32>
    %37 = arith.subf %36, %35 : vector<128x128xf32>
    %38 = vector.broadcast %32 : f32 to vector<128x128xf32>
    %39 = arith.mulf %38, %37 : vector<128x128xf32>
    %40 = arith.addf %17, %39 : vector<128x128xf32>
    %cst_24 = arith.constant 0.000000e+00 : f32
    %cst_25 = arith.constant 1.000000e+00 : f32
    %41 = vector.broadcast %cst_24 : f32 to vector<128x128xf32>
    %42 = arith.maximumf %41, %40 : vector<128x128xf32>
    %43 = vector.broadcast %cst_25 : f32 to vector<128x128xf32>
    %44 = arith.minimumf %43, %42 : vector<128x128xf32>
    %cst_26 = arith.constant 2.000000e+00 : f32
    %45 = vector.broadcast %cst_26 : f32 to vector<128x128xf32>
    %46 = arith.mulf %45, %44 : vector<128x128xf32>
    %47 = arith.subf %46, %17 : vector<128x128xf32>
    %48 = vector.broadcast %31 : f32 to vector<128x128xf32>
    %49 = arith.mulf %48, %47 : vector<128x128xf32>
    %c0_27 = arith.constant 0 : index
    %c0_28 = arith.constant 0 : index
    %50 = vector.load %arg6[%c0_27, %c0_28] : memref<128x128xf32, #tpu.memory_space<vmem>>, vector<128x128xf32>
    %cst_29 = arith.constant dense<0.000000e+00> : vector<128x128xf32>
    %51 = tpu.matmul %49, %50, %cst_29 {dimension_numbers = #tpu.dot_dimension_numbers<[1], [0], [0], [1], [0, 0, 1, 1], [], []>} : vector<128x128xf32>, vector<128x128xf32>, vector<128x128xf32> -> vector<128x128xf32>
    %52 = arith.addf %51, %30 : vector<128x128xf32>
    %cst_30 = arith.constant 0.000000e+00 : f32
    %53 = arith.subf %cst_30, %0 : f32
    %54 = vector.broadcast %53 : f32 to vector<128x128xf32>
    %55 = arith.maximumf %54, %52 : vector<128x128xf32>
    %56 = vector.broadcast %0 : f32 to vector<128x128xf32>
    %57 = arith.minimumf %56, %55 : vector<128x128xf32>
    %c2 = arith.constant 2 : index
    %58 = memref.load %arg1[%c2] : memref<4xf32, #tpu.memory_space<smem>>
    %c2_31 = arith.constant 2 : index
    %59 = memref.load %arg2[%c2_31] : memref<4xf32, #tpu.memory_space<smem>>
    %60 = tpu.concatenate %44, %57 in 1 : vector<128x128xf32>, vector<128x128xf32> -> vector<128x256xf32>
    %c0_32 = arith.constant 0 : index
    %c0_33 = arith.constant 0 : index
    %61 = vector.load %arg5[%c0_32, %c0_33] : memref<256x128xf32, #tpu.memory_space<vmem>>, vector<256x128xf32>
    %cst_34 = arith.constant dense<0.000000e+00> : vector<128x128xf32>
    %62 = tpu.matmul %60, %61, %cst_34 {dimension_numbers = #tpu.dot_dimension_numbers<[1], [0], [0], [1], [0, 0, 1, 1], [], []>} : vector<128x256xf32>, vector<256x128xf32>, vector<128x128xf32> -> vector<128x128xf32>
    %c0_35 = arith.constant 0 : index
    %c0_36 = arith.constant 0 : index
    %63 = vector.load %arg4[%c0_35, %c0_36] : memref<128x128xf32, #tpu.memory_space<vmem>>, vector<128x128xf32>
    %64 = arith.subf %63, %62 : vector<128x128xf32>
    %65 = vector.broadcast %59 : f32 to vector<128x128xf32>
    %66 = arith.mulf %65, %64 : vector<128x128xf32>
    %67 = arith.addf %44, %66 : vector<128x128xf32>
    %cst_37 = arith.constant 0.000000e+00 : f32
    %cst_38 = arith.constant 1.000000e+00 : f32
    %68 = vector.broadcast %cst_37 : f32 to vector<128x128xf32>
    %69 = arith.maximumf %68, %67 : vector<128x128xf32>
    %70 = vector.broadcast %cst_38 : f32 to vector<128x128xf32>
    %71 = arith.minimumf %70, %69 : vector<128x128xf32>
    %cst_39 = arith.constant 2.000000e+00 : f32
    %72 = vector.broadcast %cst_39 : f32 to vector<128x128xf32>
    %73 = arith.mulf %72, %71 : vector<128x128xf32>
    %74 = arith.subf %73, %44 : vector<128x128xf32>
    %75 = vector.broadcast %58 : f32 to vector<128x128xf32>
    %76 = arith.mulf %75, %74 : vector<128x128xf32>
    %c0_40 = arith.constant 0 : index
    %c0_41 = arith.constant 0 : index
    %77 = vector.load %arg6[%c0_40, %c0_41] : memref<128x128xf32, #tpu.memory_space<vmem>>, vector<128x128xf32>
    %cst_42 = arith.constant dense<0.000000e+00> : vector<128x128xf32>
    %78 = tpu.matmul %76, %77, %cst_42 {dimension_numbers = #tpu.dot_dimension_numbers<[1], [0], [0], [1], [0, 0, 1, 1], [], []>} : vector<128x128xf32>, vector<128x128xf32>, vector<128x128xf32> -> vector<128x128xf32>
    %79 = arith.addf %78, %57 : vector<128x128xf32>
    %cst_43 = arith.constant 0.000000e+00 : f32
    %80 = arith.subf %cst_43, %0 : f32
    %81 = vector.broadcast %80 : f32 to vector<128x128xf32>
    %82 = arith.maximumf %81, %79 : vector<128x128xf32>
    %83 = vector.broadcast %0 : f32 to vector<128x128xf32>
    %84 = arith.minimumf %83, %82 : vector<128x128xf32>
    %c3 = arith.constant 3 : index
    %85 = memref.load %arg2[%c3] : memref<4xf32, #tpu.memory_space<smem>>
    %86 = tpu.concatenate %71, %84 in 1 : vector<128x128xf32>, vector<128x128xf32> -> vector<128x256xf32>
    %c0_44 = arith.constant 0 : index
    %c0_45 = arith.constant 0 : index
    %87 = vector.load %arg5[%c0_44, %c0_45] : memref<256x128xf32, #tpu.memory_space<vmem>>, vector<256x128xf32>
    %cst_46 = arith.constant dense<0.000000e+00> : vector<128x128xf32>
    %88 = tpu.matmul %86, %87, %cst_46 {dimension_numbers = #tpu.dot_dimension_numbers<[1], [0], [0], [1], [0, 0, 1, 1], [], []>} : vector<128x256xf32>, vector<256x128xf32>, vector<128x128xf32> -> vector<128x128xf32>
    %c0_47 = arith.constant 0 : index
    %c0_48 = arith.constant 0 : index
    %89 = vector.load %arg4[%c0_47, %c0_48] : memref<128x128xf32, #tpu.memory_space<vmem>>, vector<128x128xf32>
    %90 = arith.subf %89, %88 : vector<128x128xf32>
    %91 = vector.broadcast %85 : f32 to vector<128x128xf32>
    %92 = arith.mulf %91, %90 : vector<128x128xf32>
    %93 = arith.addf %71, %92 : vector<128x128xf32>
    %cst_49 = arith.constant 0.000000e+00 : f32
    %cst_50 = arith.constant 1.000000e+00 : f32
    %94 = vector.broadcast %cst_49 : f32 to vector<128x128xf32>
    %95 = arith.maximumf %94, %93 : vector<128x128xf32>
    %96 = vector.broadcast %cst_50 : f32 to vector<128x128xf32>
    %97 = arith.minimumf %96, %95 : vector<128x128xf32>
    %c0_51 = arith.constant 0 : index
    %c0_52 = arith.constant 0 : index
    %98 = vector.load %arg7[%c0_51, %c0_52] : memref<128x128xf32, #tpu.memory_space<vmem>>, vector<128x128xf32>
    tpu.vector_store %arg7[%c0_51, %c0_52], %97 {strides = array<i32>} : memref<128x128xf32, #tpu.memory_space<vmem>>, vector<128x128xf32>,
    return
  }
  func.func @transform_0(%arg0: i32) -> i32 {
    %c0_i32 = arith.constant 0 : i32
    %c0_i32_0 = arith.constant 0 : i32
    return %c0_i32 : i32
  }
  func.func @transform_1(%arg0: i32) -> i32 {
    %c0_i32 = arith.constant 0 : i32
    %c0_i32_0 = arith.constant 0 : i32
    return %c0_i32 : i32
  }
  func.func @transform_2(%arg0: i32) -> i32 {
    %c0_i32 = arith.constant 0 : i32
    %c0_i32_0 = arith.constant 0 : i32
    return %c0_i32 : i32
  }
  func.func @transform_3(%arg0: i32) -> (i32, i32) {
    %c0_i32 = arith.constant 0 : i32
    %c0_i32_0 = arith.constant 0 : i32
    return %arg0, %c0_i32 : i32, i32
  }
  func.func @transform_4(%arg0: i32) -> (i32, i32) {
    %c0_i32 = arith.constant 0 : i32
    %c0_i32_0 = arith.constant 0 : i32
    %c0_i32_1 = arith.constant 0 : i32
    return %c0_i32, %c0_i32_0 : i32, i32
  }
  func.func @transform_5(%arg0: i32) -> (i32, i32) {
    %c0_i32 = arith.constant 0 : i32
    %c0_i32_0 = arith.constant 0 : i32
    %c0_i32_1 = arith.constant 0 : i32
    return %c0_i32, %c0_i32_0 : i32, i32
  }
  func.func @transform_6(%arg0: i32) -> (i32, i32) {
    %c0_i32 = arith.constant 0 : i32
    %c0_i32_0 = arith.constant 0 : i32
    return %arg0, %c0_i32 : i32, i32
  }
}

</mosaic_0001>

<llo_original>
// kernel: tpu_custom_call.1
$region0: #{tpu_custom_call.1}
  #allocation0 [shape = 'u32[]', space=smem, size = 0x4, offset = 0x4, fixed_abs, tag = 'smem constant byte address 0x4 - core index']
  #allocation1 [shape = 'u32[144,128]{1,0:T(1,128)}', space=vmem, size = 0x12000, scoped, tag = 'internal scratch']
  #allocation2 [shape = 'f32[1]{0:T(128)S(6)}', space=smem, size = 0x200, scoped, tag = 'scoped memory for tpu_custom_call.1']
  %s0 = inlined_call_operand.vmem [shape: f32[4], index: 0, kind: input, shape index: {}]
  %s1 = inlined_call_operand.vmem [shape: f32[4], index: 1, kind: input, shape index: {}]
  %s2 = inlined_call_operand.<no memory space> [shape: f32[1], index: 2, kind: input, shape index: {}]
  %s3 = inlined_call_operand.hbm [shape: f32[256,128], index: 3, kind: input, shape index: {}]
  %s4 = inlined_call_operand.hbm [shape: f32[256,128], index: 4, kind: input, shape index: {}]
  %s5 = inlined_call_operand.hbm [shape: f32[128,128], index: 5, kind: input, shape index: {}]
  %s6 = inlined_call_operand.hbm [shape: f32[256,128], index: 6, kind: output, shape index: {}]
  %s7 = sld [smem:[#allocation0]]
  $region77: #{tpu_custom_call.1} parent=0
    _
  %s9 = ssub.s32 1, %s7
  %s10 = scalar_select 0, %s9, %s7
  %11 = sst [smem:[#allocation2]] %s2
  $region1: #{tpu_custom_call.1} parent=0
    #allocation3 [shape = 'u8[512]{0}', space=smem, size = 0x200, scoped, tag = 'input window, operand 0, single buffered']
    #allocation4 [shape = 's32[2]{0}', space=sflag, size = 0x8, scoped, tag = 'scoped memory for tpu_custom_call.1']
    #allocation5 [shape = 's32[2]{0}', space=sflag, size = 0x8, scoped, tag = 'scoped memory for tpu_custom_call.1']
    #allocation6 [shape = 's32[2]{0}', space=sflag, size = 0x8, scoped, tag = 'scoped memory for tpu_custom_call.1']
    #allocation7 [shape = 'u8[512]{0}', space=smem, size = 0x200, scoped, tag = 'input window, operand 1, single buffered']
    #allocation8 [shape = 's32[1]{0}', space=sflag, size = 0x4, scoped, tag = 'scoped memory for tpu_custom_call.1']
    #allocation9 [shape = 'u8[131072]{0}', space=vmem, size = 0x20000, scoped, tag = 'input window, operand 3']
    #allocation10 [shape = 'u8[131072]{0}', space=vmem, size = 0x20000, scoped, tag = 'input window, operand 4, single buffered']
    #allocation11 [shape = 's32[1]{0}', space=sflag, size = 0x4, scoped, tag = 'scoped memory for tpu_custom_call.1']
    #allocation12 [shape = 'u8[65536]{0}', space=vmem, size = 0x10000, scoped, tag = 'input window, operand 5, single buffered']
    #allocation13 [shape = 'u8[131072]{0}', space=vmem, size = 0x20000, scoped, tag = 'output window, operand 0']
    %12 = vsyncpa [#allocation6], 0
    %13 = vsyncpa [#allocation8], 0
    %14 = vsyncpa [#allocation4], 0
    %s15 = scalar_lea.sflag [#allocation4], 1
    %16 = vsyncpa %s15, 0
    %17 = vsyncpa [#allocation11], 0
    %18 = vsyncpa [#allocation5], 0
    %s19 = scalar_lea.sflag [#allocation5], 1
    %20 = vsyncpa %s19, 0
    loop: start=0, step=1, limit=4
    $region2: #{tpu_custom_call.1} parent=1 // loop_pre_header
      _
    $region3: #{tpu_custom_call.1} parent=1 // loop_header
      %s22 = sphi 0, %s26
      %p23 = scmp.ge.s32.totalorder %s22, 4
      %s30 = sphi 0, %s30
      %s32 = sphi 0, %s30
      %s33 = sphi 0, %s32
      %s47 = sphi 0, %s33
      %s51 = sphi 0, %s51
      %s53 = sphi 0, %s51
      %s54 = sphi 0, %s53
      %s68 = sphi 0, %s54
      %s72 = sphi 0, %s72
      %s74 = sphi 0, %s72
      %s75 = sphi 0, %s74
      %s89 = sphi 0, %s75
      %s95 = sphi 0, %s97
      %s98 = sphi 0, %s95
      %s99 = sphi 0, %s98
      %s115 = sphi 0, %s99
      %s119 = sphi 0, %s119
      %s121 = sphi 0, %s119
      %s122 = sphi 0, %s121
      %s136 = sphi 0, %s122
      %s140 = sphi 0, %s140
      %s142 = sphi 0, %s140
      %s143 = sphi 0, %s142
      %s157 = sphi 0, %s143
      %s163 = sphi 0, %s165
      %s166 = sphi 0, %s163
      %s167 = sphi 0, %s166
      %s183 = sphi 0, %s167
    $region4: #{tpu_custom_call.1} parent=1 // loop_header_branch
      %25 = sbr.rel (%p23) target = $region8
    $region5: #{tpu_custom_call.1} parent=1 // loop_body
      %s27 = ssub.s32 %s22, 1
      %s28 = ssub.s32 %s22, 2
      %s29 = sadd.s32 %s22, 1
      %s31 = sadd.s32 %s30, 1
      %p34 = scmp.eq.s32.totalorder %s22, 1
      %p35 = scmp.ne.s32.totalorder %s30, %s32
      %p36 = scmp.eq.s32.totalorder %s22, 0
      %p37 = por %p35, %p36
      %p38 = scmp.ne.s32.totalorder %s30, %s32
      %p39 = scmp.eq.s32.totalorder %s27, 1
      %p40 = por %p38, %p39
      %p41 = scmp.ne.s32.totalorder %s32, %s33
      %p42 = scmp.eq.s32.totalorder %s27, 0
      %p43 = por %p41, %p42
      %p44 = scmp.ne.s32.totalorder %s32, %s33
      %p45 = scmp.eq.s32.totalorder %s28, 1
      %p46 = por %p44, %p45
      %p48 = scmp.ne.s32.totalorder %s33, %s47
      %p49 = scmp.eq.s32.totalorder %s28, 0
      %p50 = por %p48, %p49
      %s52 = sadd.s32 %s51, 1
      %p55 = scmp.eq.s32.totalorder %s22, 1
      %p56 = scmp.ne.s32.totalorder %s51, %s53
      %p57 = scmp.eq.s32.totalorder %s22, 0
      %p58 = por %p56, %p57
      %p59 = scmp.ne.s32.totalorder %s51, %s53
      %p60 = scmp.eq.s32.totalorder %s27, 1
      %p61 = por %p59, %p60
      %p62 = scmp.ne.s32.totalorder %s53, %s54
      %p63 = scmp.eq.s32.totalorder %s27, 0
      %p64 = por %p62, %p63
      %p65 = scmp.ne.s32.totalorder %s53, %s54
      %p66 = scmp.eq.s32.totalorder %s28, 1
      %p67 = por %p65, %p66
      %p69 = scmp.ne.s32.totalorder %s54, %s68
      %p70 = scmp.eq.s32.totalorder %s28, 0
      %p71 = por %p69, %p70
      %s73 = sadd.s32 %s72, 1
      %p76 = scmp.eq.s32.totalorder %s22, 1
      %p77 = scmp.ne.s32.totalorder %s72, %s74
      %p78 = scmp.eq.s32.totalorder %s22, 0
      %p79 = por %p77, %p78
      %p80 = scmp.ne.s32.totalorder %s72, %s74
      %p81 = scmp.eq.s32.totalorder %s27, 1
      %p82 = por %p80, %p81
      %p83 = scmp.ne.s32.totalorder %s74, %s75
      %p84 = scmp.eq.s32.totalorder %s27, 0
      %p85 = por %p83, %p84
      %p86 = scmp.ne.s32.totalorder %s74, %s75
      %p87 = scmp.eq.s32.totalorder %s28, 1
      %p88 = por %p86, %p87
      %p90 = scmp.ne.s32.totalorder %s75, %s89
      %p91 = scmp.eq.s32.totalorder %s28, 0
      %p92 = por %p90, %p91
      %s93 = ssub.s32 %s22, %s29
      %p94 = scmp.eq.s32.totalorder %s93, 0
      %s96 = sadd.s32 %s95, 1
      %s97 = scalar_select %p94, %s95, %s96
      %p100 = pneg %p94
      %p101 = scmp.eq.s32.totalorder %s22, 1
      %p102 = por %p100, %p101
      %p103 = scmp.ne.s32.totalorder %s95, %s98
      %p104 = scmp.eq.s32.totalorder %s22, 0
      %p105 = por %p103, %p104
      %p106 = scmp.ne.s32.totalorder %s95, %s98
      %p107 = scmp.eq.s32.totalorder %s27, 1
      %p108 = por %p106, %p107
      %p109 = scmp.ne.s32.totalorder %s98, %s99
      %p110 = scmp.eq.s32.totalorder %s27, 0
      %p111 = por %p109, %p110
      %p112 = scmp.ne.s32.totalorder %s98, %s99
      %p113 = scmp.eq.s32.totalorder %s28, 1
      %p114 = por %p112, %p113
      %p116 = scmp.ne.s32.totalorder %s99, %s115
      %p117 = scmp.eq.s32.totalorder %s28, 0
      %p118 = por %p116, %p117
      %s120 = sadd.s32 %s119, 1
      %p123 = scmp.eq.s32.totalorder %s22, 1
      %p124 = scmp.ne.s32.totalorder %s119, %s121
      %p125 = scmp.eq.s32.totalorder %s22, 0
      %p126 = por %p124, %p125
      %p127 = scmp.ne.s32.totalorder %s119, %s121
      %p128 = scmp.eq.s32.totalorder %s27, 1
      %p129 = por %p127, %p128
      %p130 = scmp.ne.s32.totalorder %s121, %s122
      %p131 = scmp.eq.s32.totalorder %s27, 0
      %p132 = por %p130, %p131
      %p133 = scmp.ne.s32.totalorder %s121, %s122
      %p134 = scmp.eq.s32.totalorder %s28, 1
      %p135 = por %p133, %p134
      %p137 = scmp.ne.s32.totalorder %s122, %s136
      %p138 = scmp.eq.s32.totalorder %s28, 0
      %p139 = por %p137, %p138
      %s141 = sadd.s32 %s140, 1
      %p144 = scmp.eq.s32.totalorder %s22, 1
      %p145 = scmp.ne.s32.totalorder %s140, %s142
      %p146 = scmp.eq.s32.totalorder %s22, 0
      %p147 = por %p145, %p146
      %p148 = scmp.ne.s32.totalorder %s140, %s142
      %p149 = scmp.eq.s32.totalorder %s27, 1
      %p150 = por %p148, %p149
      %p151 = scmp.ne.s32.totalorder %s142, %s143
      %p152 = scmp.eq.s32.totalorder %s27, 0
      %p153 = por %p151, %p152
      %p154 = scmp.ne.s32.totalorder %s142, %s143
      %p155 = scmp.eq.s32.totalorder %s28, 1
      %p156 = por %p154, %p155
      %p158 = scmp.ne.s32.totalorder %s143, %s157
      %p159 = scmp.eq.s32.totalorder %s28, 0
      %p160 = por %p158, %p159
      %s161 = ssub.s32 %s22, %s29
      %p162 = scmp.eq.s32.totalorder %s161, 0
      %s164 = sadd.s32 %s163, 1
      %s165 = scalar_select %p162, %s163, %s164
      %p168 = pneg %p162
      %p169 = scmp.eq.s32.totalorder %s22, 1
      %p170 = por %p168, %p169
      %p171 = scmp.ne.s32.totalorder %s163, %s166
      %p172 = scmp.eq.s32.totalorder %s22, 0
      %p173 = por %p171, %p172
      %p174 = scmp.ne.s32.totalorder %s163, %s166
      %p175 = scmp.eq.s32.totalorder %s27, 1
      %p176 = por %p174, %p175
      %p177 = scmp.ne.s32.totalorder %s166, %s167
      %p178 = scmp.eq.s32.totalorder %s27, 0
      %p179 = por %p177, %p178
      %p180 = scmp.ne.s32.totalorder %s166, %s167
      %p181 = scmp.eq.s32.totalorder %s28, 1
      %p182 = por %p180, %p181
      %p184 = scmp.ne.s32.totalorder %s167, %s183
      %p185 = scmp.eq.s32.totalorder %s28, 0
      %p186 = por %p184, %p185
      %p187 = scmp.le.s32.totalorder 1, %s22
      %p188 = scmp.lt.s32.totalorder %s22, 3
      %p189 = pnand %p187, %p188
      %p190 = pneg %p189
      // Predicated region
      $region9: #{tpu_custom_call.1} parent=5 // pred_check
        _
      $region10: #{tpu_custom_call.1} parent=5 // pred_check_branch
        %192 = sbr.rel (%p189) target = $region12
      $region11: #{tpu_custom_call.1} parent=5 // pred_region
        %s193 = ssub.s32 %s22, 1
        // Predicated region
        $region13: #{tpu_custom_call.1} parent=11 // pred_check
          %p194 = pneg %p43
        $region14: #{tpu_custom_call.1} parent=11 // pred_check_branch
          %196 = sbr.rel (%p194) target = $region16
        $region15: #{tpu_custom_call.1} parent=11 // pred_region
          %s198 = ssub.s32 16, 16
          %199 = vsyncadd [#allocation6], %s198
          %s201 = sshll.u32 %s0, 4
          %s202 = int_to_ptr.vmem [resolvable:$true] %s201
          %204 = dma.vmem_to_smem %s202, 16, [#allocation3], [#allocation6]
        $region16: #{tpu_custom_call.1} parent=11 // pred_fallthru
          _
        // Predicated region
        $region17: #{tpu_custom_call.1} parent=11 // pred_check
          %p205 = pneg %p64
        $region18: #{tpu_custom_call.1} parent=11 // pred_check_branch
          %207 = sbr.rel (%p205) target = $region20
        $region19: #{tpu_custom_call.1} parent=11 // pred_region
          %s209 = ssub.s32 16, 16
          %210 = vsyncadd [#allocation8], %s209
          %s212 = sshll.u32 %s1, 4
          %s213 = int_to_ptr.vmem [resolvable:$true] %s212
          %215 = dma.vmem_to_smem %s213, 16, [#allocation7], [#allocation8]
        $region20: #{tpu_custom_call.1} parent=11 // pred_fallthru
          _
        // Predicated region
        $region21: #{tpu_custom_call.1} parent=11 // pred_check
          %p216 = pneg %p85
        $region22: #{tpu_custom_call.1} parent=11 // pred_check_branch
          %218 = sbr.rel (%p216) target = $region24
        $region23: #{tpu_custom_call.1} parent=11 // pred_region
          _
        $region24: #{tpu_custom_call.1} parent=11 // pred_fallthru
          _
        // Predicated region
        $region25: #{tpu_custom_call.1} parent=11 // pred_check
          %p219 = pneg %p132
        $region26: #{tpu_custom_call.1} parent=11 // pred_check_branch
          %221 = sbr.rel (%p219) target = $region28
        $region27: #{tpu_custom_call.1} parent=11 // pred_region
          %s223 = ssub.s32 4096, 4096
          %224 = vsyncadd [#allocation11], %s223
          %s225 = sshll.u32 [#allocation10], 4
          %s226 = int_to_ptr.vmem [resolvable:$true] %s225
          %231 = dma.hbm_to_vmem [thread:$0]  %s4, 4096, %s226, [#allocation11], 128, 128, 8
        $region28: #{tpu_custom_call.1} parent=11 // pred_fallthru
          _
        // Predicated region
        $region29: #{tpu_custom_call.1} parent=11 // pred_check
          %p232 = pneg %p153
        $region30: #{tpu_custom_call.1} parent=11 // pred_check_branch
          %234 = sbr.rel (%p232) target = $region32
        $region31: #{tpu_custom_call.1} parent=11 // pred_region
          %s236 = ssub.s32 2048, 2048
          %237 = vsyncadd [#allocation11], %s236
          %s238 = sshll.u32 [#allocation12], 4
          %s239 = int_to_ptr.vmem [resolvable:$true] %s238
          %244 = dma.hbm_to_vmem [thread:$0]  %s5, 2048, %s239, [#allocation11], 128, 128, 8
        $region32: #{tpu_custom_call.1} parent=11 // pred_fallthru
          _
      $region12: #{tpu_custom_call.1} parent=5 // pred_fallthru
        _
      %p245 = scmp.lt.s32.totalorder %s22, 2
      // Predicated region
      $region33: #{tpu_custom_call.1} parent=5 // pred_check
        %p246 = pneg %p245
      $region34: #{tpu_custom_call.1} parent=5 // pred_check_branch
        %248 = sbr.rel (%p246) target = $region36
      $region35: #{tpu_custom_call.1} parent=5 // pred_region
        // Predicated region
        $region37: #{tpu_custom_call.1} parent=35 // pred_check
          %p249 = pneg %p105
        $region38: #{tpu_custom_call.1} parent=35 // pred_check_branch
          %251 = sbr.rel (%p249) target = $region40
        $region39: #{tpu_custom_call.1} parent=35 // pred_region
          %s252 = sand.u32 %s95, 1
          %s253 = scalar_lea.sflag [#allocation4], %s252
          %s254 = sand.u32 %s95, 1
          %s255 = smul.addr %s254, 128
          %s256 = scalar_lea.vmem [#allocation9], %s255
          %s257 = smul.u32 16, %s22
          %s259 = ssub.s32 2048, 2048
          %260 = vsyncadd %s253, %s259
          %s261 = smul.addr %s257, 128
          %s262 = scalar_lea.hbm %s3, %s261
          %s263 = sshll.u32 %s256, 4
          %s264 = int_to_ptr.vmem [resolvable:$true] %s263
          %269 = dma.hbm_to_vmem [thread:$0]  %s262, 2048, %s264, %s253, 128, 128, 8
        $region40: #{tpu_custom_call.1} parent=35 // pred_fallthru
          _
      $region36: #{tpu_custom_call.1} parent=5 // pred_fallthru
        _
      %p270 = scmp.le.s32.totalorder 1, %s22
      %p271 = scmp.lt.s32.totalorder %s22, 3
      %p272 = pnand %p270, %p271
      %p273 = pneg %p272
      // Predicated region
      $region41: #{tpu_custom_call.1} parent=5 // pred_check
        _
      $region42: #{tpu_custom_call.1} parent=5 // pred_check_branch
        %275 = sbr.rel (%p272) target = $region44
      $region43: #{tpu_custom_call.1} parent=5 // pred_region
        %s276 = ssub.s32 %s22, 1
        // Predicated region
        $region45: #{tpu_custom_call.1} parent=43 // pred_check
          %p277 = pneg %p43
        $region46: #{tpu_custom_call.1} parent=43 // pred_check_branch
          %279 = sbr.rel (%p277) target = $region48
        $region47: #{tpu_custom_call.1} parent=43 // pred_region
          %280 = dma.done [#allocation6], 16
        $region48: #{tpu_custom_call.1} parent=43 // pred_fallthru
          _
        // Predicated region
        $region49: #{tpu_custom_call.1} parent=43 // pred_check
          %p281 = pneg %p64
        $region50: #{tpu_custom_call.1} parent=43 // pred_check_branch
          %283 = sbr.rel (%p281) target = $region52
        $region51: #{tpu_custom_call.1} parent=43 // pred_region
          %284 = dma.done [#allocation8], 16
        $region52: #{tpu_custom_call.1} parent=43 // pred_fallthru
          _
        %s285 = sand.u32 %s98, 1
        %s286 = scalar_lea.sflag [#allocation4], %s285
        %s287 = sand.u32 %s98, 1
        %s288 = smul.addr %s287, 128
        %s289 = scalar_lea.vmem [#allocation9], %s288
        // Predicated region
        $region53: #{tpu_custom_call.1} parent=43 // pred_check
          %p290 = pneg %p111
        $region54: #{tpu_custom_call.1} parent=43 // pred_check_branch
          %292 = sbr.rel (%p290) target = $region56
        $region55: #{tpu_custom_call.1} parent=43 // pred_region
          %293 = dma.done %s286, 2048
        $region56: #{tpu_custom_call.1} parent=43 // pred_fallthru
          _
        // Predicated region
        $region57: #{tpu_custom_call.1} parent=43 // pred_check
          %p294 = pneg %p132
        $region58: #{tpu_custom_call.1} parent=43 // pred_check_branch
          %296 = sbr.rel (%p294) target = $region60
        $region59: #{tpu_custom_call.1} parent=43 // pred_region
          %297 = dma.done [#allocation11], 4096
        $region60: #{tpu_custom_call.1} parent=43 // pred_fallthru
          _
        // Predicated region
        $region61: #{tpu_custom_call.1} parent=43 // pred_check
          %p298 = pneg %p153
        $region62: #{tpu_custom_call.1} parent=43 // pred_check_branch
          %300 = sbr.rel (%p298) target = $region64
        $region63: #{tpu_custom_call.1} parent=43 // pred_region
          %301 = dma.done [#allocation11], 2048
        $region64: #{tpu_custom_call.1} parent=43 // pred_fallthru
          _
        %302 = sfence
        %p303 = pneg %p43
        %p304 = pneg %p40
        %p305 = pneg %p64
        %p306 = pneg %p61
        %p307 = pneg %p85
        %p308 = pneg %p82
        %s309 = sand.u32 %s98, 1
        %s310 = scalar_lea.sflag [#allocation4], %s309
        %s311 = sand.u32 %s98, 1
        %s312 = smul.addr %s311, 128
        %s313 = scalar_lea.vmem [#allocation9], %s312
        %p314 = pneg %p111
        %p315 = pneg %p108
        %p316 = pneg %p132
        %p317 = pneg %p129
        %p318 = pneg %p153
        %p319 = pneg %p150
        %p320 = pneg %p179
        %p321 = pneg %p176
        %s322 = sand.u32 %s166, 1
        %s323 = scalar_lea.sflag [#allocation5], %s322
        %s324 = sand.u32 %s166, 1
        %s325 = smul.addr %s324, 128
        %s326 = scalar_lea.vmem [#allocation13], %s325
        %s327 = smul.u32 16, %s27
        %s328 = smul.u32 16, %s27
        %s329 = sld [smem:[#allocation2]]
        %v330 = vld [vmem:[%s289] sm:$0xff]
        %v331 = vld [vmem:[%s289 + $0x8] sm:$0xff]
        %v332 = vld [vmem:[%s289 + $0x10] sm:$0xff]
        %v333 = vld [vmem:[%s289 + $0x18] sm:$0xff]
        %v334 = vld [vmem:[%s289 + $0x20] sm:$0xff]
        %v335 = vld [vmem:[%s289 + $0x28] sm:$0xff]
        %v336 = vld [vmem:[%s289 + $0x30] sm:$0xff]
        %v337 = vld [vmem:[%s289 + $0x38] sm:$0xff]
        %v338 = vld [vmem:[%s289 + $0x40] sm:$0xff]
        %v339 = vld [vmem:[%s289 + $0x48] sm:$0xff]
        %v340 = vld [vmem:[%s289 + $0x50] sm:$0xff]
        %v341 = vld [vmem:[%s289 + $0x58] sm:$0xff]
        %v342 = vld [vmem:[%s289 + $0x60] sm:$0xff]
        %v343 = vld [vmem:[%s289 + $0x68] sm:$0xff]
        %v344 = vld [vmem:[%s289 + $0x70] sm:$0xff]
        %v345 = vld [vmem:[%s289 + $0x78] sm:$0xff]
        %v346 = vld [vmem:[#allocation12] sm:$0xff]
        %v347 = vld [vmem:[#allocation12 + $0x8] sm:$0xff]
        %v348 = vld [vmem:[#allocation12 + $0x10] sm:$0xff]
        %v349 = vld [vmem:[#allocation12 + $0x18] sm:$0xff]
        %v350 = vld [vmem:[#allocation12 + $0x20] sm:$0xff]
        %v351 = vld [vmem:[#allocation12 + $0x28] sm:$0xff]
        %v352 = vld [vmem:[#allocation12 + $0x30] sm:$0xff]
        %v353 = vld [vmem:[#allocation12 + $0x38] sm:$0xff]
        %v354 = vld [vmem:[#allocation12 + $0x40] sm:$0xff]
        %v355 = vld [vmem:[#allocation12 + $0x48] sm:$0xff]
        %v356 = vld [vmem:[#allocation12 + $0x50] sm:$0xff]
        %v357 = vld [vmem:[#allocation12 + $0x58] sm:$0xff]
        %v358 = vld [vmem:[#allocation12 + $0x60] sm:$0xff]
        %v359 = vld [vmem:[#allocation12 + $0x68] sm:$0xff]
        %v360 = vld [vmem:[#allocation12 + $0x70] sm:$0xff]
        %v361 = vld [vmem:[#allocation12 + $0x78] sm:$0xff]
        %362 = vmatprep.subr.mxu0 0.0
        %363 = vmatpush1.msra.mxu0 %v361
        %364 = vmatprep.subr.mxu0 0.0
        %365 = vmatpush1.msra.mxu0 %v360
        %366 = vmatprep.subr.mxu0 0.0
        %367 = vmatpush1.msra.mxu0 %v359
        %368 = vmatprep.subr.mxu0 0.0
        %369 = vmatpush1.msra.mxu0 %v358
        %370 = vmatprep.subr.mxu0 0.0
        %371 = vmatpush1.msra.mxu0 %v357
        %372 = vmatprep.subr.mxu0 0.0
        %373 = vmatpush1.msra.mxu0 %v356
        %374 = vmatprep.subr.mxu0 0.0
        %375 = vmatpush1.msra.mxu0 %v355
        %376 = vmatprep.subr.mxu0 0.0
        %377 = vmatpush1.msra.mxu0 %v354
        %378 = vmatprep.subr.mxu0 0.0
        %379 = vmatpush1.msra.mxu0 %v353
        %380 = vmatprep.subr.mxu0 0.0
        %381 = vmatpush1.msra.mxu0 %v352
        %382 = vmatprep.subr.mxu0 0.0
        %383 = vmatpush1.msra.mxu0 %v351
        %384 = vmatprep.subr.mxu0 0.0
        %385 = vmatpush1.msra.mxu0 %v350
        %386 = vmatprep.subr.mxu0 0.0
        %387 = vmatpush1.msra.mxu0 %v349
        %388 = vmatprep.subr.mxu0 0.0
        %389 = vmatpush1.msra.mxu0 %v348
        %390 = vmatprep.subr.mxu0 0.0
        %391 = vmatpush1.msra.mxu0 %v347
        %392 = vmatprep.subr.mxu0 0.0
        %393 = vmatpush1.msra.mxu0 %v346
        %394 = vmatprep.subr.mxu0 0.0
        %395 = vmatpush2.msra.mxu0 0.0
        %396 = vmatprep.subr.mxu0 0.0
        %397 = vmatpush2.msra.mxu0 0.0
        %398 = vmatprep.subr.mxu0 0.0
        %399 = vmatpush2.msra.mxu0 0.0
        %400 = vmatprep.subr.mxu0 0.0
        %401 = vmatpush2.msra.mxu0 0.0
        %402 = vmatprep.subr.mxu0 0.0
        %403 = vmatpush2.msra.mxu0 0.0
        %404 = vmatprep.subr.mxu0 0.0
        %405 = vmatpush2.msra.mxu0 0.0
        %406 = vmatprep.subr.mxu0 0.0
        %407 = vmatpush2.msra.mxu0 0.0
        %408 = vmatprep.subr.mxu0 0.0
        %409 = vmatpush2.msra.mxu0 0.0
        %410 = vmatprep.subr.mxu0 0.0
        %411 = vmatpush2.msra.mxu0 0.0
        %412 = vmatprep.subr.mxu0 0.0
        %413 = vmatpush2.msra.mxu0 0.0
        %414 = vmatprep.subr.mxu0 0.0
        %415 = vmatpush2.msra.mxu0 0.0
        %416 = vmatprep.subr.mxu0 0.0
        %417 = vmatpush2.msra.mxu0 0.0
        %418 = vmatprep.subr.mxu0 0.0
        %419 = vmatpush2.msra.mxu0 0.0
        %420 = vmatprep.subr.mxu0 0.0
        %421 = vmatpush2.msra.mxu0 0.0
        %422 = vmatprep.subr.mxu0 0.0
        %423 = vmatpush2.msra.mxu0 0.0
        %424 = vmatprep.subr.mxu0 0.0
        %425 = vmatpush2.msra.mxu0 0.0
        %426 = vmatprep.mubr.f32.mxu0 0.0
        %427 = vmatmul.mubr.f32.gmra.mxu0 %v330
        %v428 = vpop.f32.mrf.mxu0
        %v429 = vadd.f32 0.0, %v428
        %v430 = vpop.f32.mrf.mxu0
        %431 = vmatprep.mubr.f32.mxu0 0.0
        %432 = vmatmul.mubr.f32.gmra.mxu0 %v331
        %v433 = vpop.f32.mrf.mxu0
        %v434 = vadd.f32 0.0, %v433
        %v435 = vpop.f32.mrf.mxu0
        %436 = vmatprep.mubr.f32.mxu0 0.0
        %437 = vmatmul.mubr.f32.gmra.mxu0 %v332
        %v438 = vpop.f32.mrf.mxu0
        %v439 = vadd.f32 0.0, %v438
        %v440 = vpop.f32.mrf.mxu0
        %441 = vmatprep.mubr.f32.mxu0 0.0
        %442 = vmatmul.mubr.f32.gmra.mxu0 %v333
        %v443 = vpop.f32.mrf.mxu0
        %v444 = vadd.f32 0.0, %v443
        %v445 = vpop.f32.mrf.mxu0
        %446 = vmatprep.mubr.f32.mxu0 0.0
        %447 = vmatmul.mubr.f32.gmra.mxu0 %v334
        %v448 = vpop.f32.mrf.mxu0
        %v449 = vadd.f32 0.0, %v448
        %v450 = vpop.f32.mrf.mxu0
        %451 = vmatprep.mubr.f32.mxu0 0.0
        %452 = vmatmul.mubr.f32.gmra.mxu0 %v335
        %v453 = vpop.f32.mrf.mxu0
        %v454 = vadd.f32 0.0, %v453
        %v455 = vpop.f32.mrf.mxu0
        %456 = vmatprep.mubr.f32.mxu0 0.0
        %457 = vmatmul.mubr.f32.gmra.mxu0 %v336
        %v458 = vpop.f32.mrf.mxu0
        %v459 = vadd.f32 0.0, %v458
        %v460 = vpop.f32.mrf.mxu0
        %461 = vmatprep.mubr.f32.mxu0 0.0
        %462 = vmatmul.mubr.f32.gmra.mxu0 %v337
        %v463 = vpop.f32.mrf.mxu0
        %v464 = vadd.f32 0.0, %v463
        %v465 = vpop.f32.mrf.mxu0
        %466 = vmatprep.mubr.f32.mxu0 0.0
        %467 = vmatmul.mubr.f32.gmra.mxu0 %v338
        %v468 = vpop.f32.mrf.mxu0
        %v469 = vadd.f32 0.0, %v468
        %v470 = vpop.f32.mrf.mxu0
        %471 = vmatprep.mubr.f32.mxu0 0.0
        %472 = vmatmul.mubr.f32.gmra.mxu0 %v339
        %v473 = vpop.f32.mrf.mxu0
        %v474 = vadd.f32 0.0, %v473
        %v475 = vpop.f32.mrf.mxu0
        %476 = vmatprep.mubr.f32.mxu0 0.0
        %477 = vmatmul.mubr.f32.gmra.mxu0 %v340
        %v478 = vpop.f32.mrf.mxu0
        %v479 = vadd.f32 0.0, %v478
        %v480 = vpop.f32.mrf.mxu0
        %481 = vmatprep.mubr.f32.mxu0 0.0
        %482 = vmatmul.mubr.f32.gmra.mxu0 %v341
        %v483 = vpop.f32.mrf.mxu0
        %v484 = vadd.f32 0.0, %v483
        %v485 = vpop.f32.mrf.mxu0
        %486 = vmatprep.mubr.f32.mxu0 0.0
        %487 = vmatmul.mubr.f32.gmra.mxu0 %v342
        %v488 = vpop.f32.mrf.mxu0
        %v489 = vadd.f32 0.0, %v488
        %v490 = vpop.f32.mrf.mxu0
        %491 = vmatprep.mubr.f32.mxu0 0.0
        %492 = vmatmul.mubr.f32.gmra.mxu0 %v343
        %v493 = vpop.f32.mrf.mxu0
        %v494 = vadd.f32 0.0, %v493
        %v495 = vpop.f32.mrf.mxu0
        %496 = vmatprep.mubr.f32.mxu0 0.0
        %497 = vmatmul.mubr.f32.gmra.mxu0 %v344
        %v498 = vpop.f32.mrf.mxu0
        %v499 = vadd.f32 0.0, %v498
        %v500 = vpop.f32.mrf.mxu0
        %501 = vmatprep.mubr.f32.mxu0 0.0
        %502 = vmatmul.mubr.f32.gmra.mxu0 %v345
        %v503 = vpop.f32.mrf.mxu0
        %v504 = vadd.f32 0.0, %v503
        %v505 = vpop.f32.mrf.mxu0
        %506 = vdwg.mxu0
        %s507 = sld [smem:[#allocation3]]
        %s508 = sld [smem:[#allocation7]]
        %v509 = vld [vmem:[#allocation10] sm:$0xff]
        %v510 = vld [vmem:[#allocation10 + $0x8] sm:$0xff]
        %v511 = vld [vmem:[#allocation10 + $0x10] sm:$0xff]
        %v512 = vld [vmem:[#allocation10 + $0x18] sm:$0xff]
        %v513 = vld [vmem:[#allocation10 + $0x20] sm:$0xff]
        %v514 = vld [vmem:[#allocation10 + $0x28] sm:$0xff]
        %v515 = vld [vmem:[#allocation10 + $0x30] sm:$0xff]
        %v516 = vld [vmem:[#allocation10 + $0x38] sm:$0xff]
        %v517 = vld [vmem:[#allocation10 + $0x40] sm:$0xff]
        %v518 = vld [vmem:[#allocation10 + $0x48] sm:$0xff]
        %v519 = vld [vmem:[#allocation10 + $0x50] sm:$0xff]
        %v520 = vld [vmem:[#allocation10 + $0x58] sm:$0xff]
        %v521 = vld [vmem:[#allocation10 + $0x60] sm:$0xff]
        %v522 = vld [vmem:[#allocation10 + $0x68] sm:$0xff]
        %v523 = vld [vmem:[#allocation10 + $0x70] sm:$0xff]
        %v524 = vld [vmem:[#allocation10 + $0x78] sm:$0xff]
        %v525 = vld [vmem:[#allocation10 + $0x80] sm:$0xff]
        %v526 = vld [vmem:[#allocation10 + $0x88] sm:$0xff]
        %v527 = vld [vmem:[#allocation10 + $0x90] sm:$0xff]
        %v528 = vld [vmem:[#allocation10 + $0x98] sm:$0xff]
        %v529 = vld [vmem:[#allocation10 + $0xa0] sm:$0xff]
        %v530 = vld [vmem:[#allocation10 + $0xa8] sm:$0xff]
        %v531 = vld [vmem:[#allocation10 + $0xb0] sm:$0xff]
        %v532 = vld [vmem:[#allocation10 + $0xb8] sm:$0xff]
        %v533 = vld [vmem:[#allocation10 + $0xc0] sm:$0xff]
        %v534 = vld [vmem:[#allocation10 + $0xc8] sm:$0xff]
        %v535 = vld [vmem:[#allocation10 + $0xd0] sm:$0xff]
        %v536 = vld [vmem:[#allocation10 + $0xd8] sm:$0xff]
        %v537 = vld [vmem:[#allocation10 + $0xe0] sm:$0xff]
        %v538 = vld [vmem:[#allocation10 + $0xe8] sm:$0xff]
        %v539 = vld [vmem:[#allocation10 + $0xf0] sm:$0xff]
        %v540 = vld [vmem:[#allocation10 + $0xf8] sm:$0xff]
        %541 = vmatprep.subr.mxu0 0.0
        %542 = vmatpush1.msra.mxu0 %v524
        %543 = vmatprep.subr.mxu0 0.0
        %544 = vmatpush1.msra.mxu0 %v523
        %545 = vmatprep.subr.mxu0 0.0
        %546 = vmatpush1.msra.mxu0 %v522
        %547 = vmatprep.subr.mxu0 0.0
        %548 = vmatpush1.msra.mxu0 %v521
        %549 = vmatprep.subr.mxu0 0.0
        %550 = vmatpush1.msra.mxu0 %v520
        %551 = vmatprep.subr.mxu0 0.0
        %552 = vmatpush1.msra.mxu0 %v519
        %553 = vmatprep.subr.mxu0 0.0
        %554 = vmatpush1.msra.mxu0 %v518
        %555 = vmatprep.subr.mxu0 0.0
        %556 = vmatpush1.msra.mxu0 %v517
        %557 = vmatprep.subr.mxu0 0.0
        %558 = vmatpush1.msra.mxu0 %v516
        %559 = vmatprep.subr.mxu0 0.0
        %560 = vmatpush1.msra.mxu0 %v515
        %561 = vmatprep.subr.mxu0 0.0
        %562 = vmatpush1.msra.mxu0 %v514
        %563 = vmatprep.subr.mxu0 0.0
        %564 = vmatpush1.msra.mxu0 %v513
        %565 = vmatprep.subr.mxu0 0.0
        %566 = vmatpush1.msra.mxu0 %v512
        %567 = vmatprep.subr.mxu0 0.0
        %568 = vmatpush1.msra.mxu0 %v511
        %569 = vmatprep.subr.mxu0 0.0
        %570 = vmatpush1.msra.mxu0 %v510
        %571 = vmatprep.subr.mxu0 0.0
        %572 = vmatpush1.msra.mxu0 %v509
        %573 = vmatprep.subr.mxu0 0.0
        %574 = vmatpush2.msra.mxu0 %v540
        %575 = vmatprep.subr.mxu0 0.0
        %576 = vmatpush2.msra.mxu0 %v539
        %577 = vmatprep.subr.mxu0 0.0
        %578 = vmatpush2.msra.mxu0 %v538
        %579 = vmatprep.subr.mxu0 0.0
        %580 = vmatpush2.msra.mxu0 %v537
        %581 = vmatprep.subr.mxu0 0.0
        %582 = vmatpush2.msra.mxu0 %v536
        %583 = vmatprep.subr.mxu0 0.0
        %584 = vmatpush2.msra.mxu0 %v535
        %585 = vmatprep.subr.mxu0 0.0
        %586 = vmatpush2.msra.mxu0 %v534
        %587 = vmatprep.subr.mxu0 0.0
        %588 = vmatpush2.msra.mxu0 %v533
        %589 = vmatprep.subr.mxu0 0.0
        %590 = vmatpush2.msra.mxu0 %v532
        %591 = vmatprep.subr.mxu0 0.0
        %592 = vmatpush2.msra.mxu0 %v531
        %593 = vmatprep.subr.mxu0 0.0
        %594 = vmatpush2.msra.mxu0 %v530
        %595 = vmatprep.subr.mxu0 0.0
        %596 = vmatpush2.msra.mxu0 %v529
        %597 = vmatprep.subr.mxu0 0.0
        %598 = vmatpush2.msra.mxu0 %v528
        %599 = vmatprep.subr.mxu0 0.0
        %600 = vmatpush2.msra.mxu0 %v527
        %601 = vmatprep.subr.mxu0 0.0
        %602 = vmatpush2.msra.mxu0 %v526
        %603 = vmatprep.subr.mxu0 0.0
        %604 = vmatpush2.msra.mxu0 %v525
        %605 = vmatprep.mubr.f32.mxu0 %v429
        %606 = vmatmul.mubr.f32.gmra.mxu0 %v330
        %v607 = vpop.f32.mrf.mxu0
        %v608 = vadd.f32 0.0, %v607
        %v609 = vpop.f32.mrf.mxu0
        %610 = vmatprep.mubr.f32.mxu0 %v434
        %611 = vmatmul.mubr.f32.gmra.mxu0 %v331
        %v612 = vpop.f32.mrf.mxu0
        %v613 = vadd.f32 0.0, %v612
        %v614 = vpop.f32.mrf.mxu0
        %615 = vmatprep.mubr.f32.mxu0 %v439
        %616 = vmatmul.mubr.f32.gmra.mxu0 %v332
        %v617 = vpop.f32.mrf.mxu0
        %v618 = vadd.f32 0.0, %v617
        %v619 = vpop.f32.mrf.mxu0
        %620 = vmatprep.mubr.f32.mxu0 %v444
        %621 = vmatmul.mubr.f32.gmra.mxu0 %v333
        %v622 = vpop.f32.mrf.mxu0
        %v623 = vadd.f32 0.0, %v622
        %v624 = vpop.f32.mrf.mxu0
        %625 = vmatprep.mubr.f32.mxu0 %v449
        %626 = vmatmul.mubr.f32.gmra.mxu0 %v334
        %v627 = vpop.f32.mrf.mxu0
        %v628 = vadd.f32 0.0, %v627
        %v629 = vpop.f32.mrf.mxu0
        %630 = vmatprep.mubr.f32.mxu0 %v454
        %631 = vmatmul.mubr.f32.gmra.mxu0 %v335
        %v632 = vpop.f32.mrf.mxu0
        %v633 = vadd.f32 0.0, %v632
        %v634 = vpop.f32.mrf.mxu0
        %635 = vmatprep.mubr.f32.mxu0 %v459
        %636 = vmatmul.mubr.f32.gmra.mxu0 %v336
        %v637 = vpop.f32.mrf.mxu0
        %v638 = vadd.f32 0.0, %v637
        %v639 = vpop.f32.mrf.mxu0
        %640 = vmatprep.mubr.f32.mxu0 %v464
        %641 = vmatmul.mubr.f32.gmra.mxu0 %v337
        %v642 = vpop.f32.mrf.mxu0
        %v643 = vadd.f32 0.0, %v642
        %v644 = vpop.f32.mrf.mxu0
        %645 = vmatprep.mubr.f32.mxu0 %v469
        %646 = vmatmul.mubr.f32.gmra.mxu0 %v338
        %v647 = vpop.f32.mrf.mxu0
        %v648 = vadd.f32 0.0, %v647
        %v649 = vpop.f32.mrf.mxu0
        %650 = vmatprep.mubr.f32.mxu0 %v474
        %651 = vmatmul.mubr.f32.gmra.mxu0 %v339
        %v652 = vpop.f32.mrf.mxu0
        %v653 = vadd.f32 0.0, %v652
        %v654 = vpop.f32.mrf.mxu0
        %655 = vmatprep.mubr.f32.mxu0 %v479
        %656 = vmatmul.mubr.f32.gmra.mxu0 %v340
        %v657 = vpop.f32.mrf.mxu0
        %v658 = vadd.f32 0.0, %v657
        %v659 = vpop.f32.mrf.mxu0
        %660 = vmatprep.mubr.f32.mxu0 %v484
        %661 = vmatmul.mubr.f32.gmra.mxu0 %v341
        %v662 = vpop.f32.mrf.mxu0
        %v663 = vadd.f32 0.0, %v662
        %v664 = vpop.f32.mrf.mxu0
        %665 = vmatprep.mubr.f32.mxu0 %v489
        %666 = vmatmul.mubr.f32.gmra.mxu0 %v342
        %v667 = vpop.f32.mrf.mxu0
        %v668 = vadd.f32 0.0, %v667
        %v669 = vpop.f32.mrf.mxu0
        %670 = vmatprep.mubr.f32.mxu0 %v494
        %671 = vmatmul.mubr.f32.gmra.mxu0 %v343
        %v672 = vpop.f32.mrf.mxu0
        %v673 = vadd.f32 0.0, %v672
        %v674 = vpop.f32.mrf.mxu0
        %675 = vmatprep.mubr.f32.mxu0 %v499
        %676 = vmatmul.mubr.f32.gmra.mxu0 %v344
        %v677 = vpop.f32.mrf.mxu0
        %v678 = vadd.f32 0.0, %v677
        %v679 = vpop.f32.mrf.mxu0
        %680 = vmatprep.mubr.f32.mxu0 %v504
        %681 = vmatmul.mubr.f32.gmra.mxu0 %v345
        %v682 = vpop.f32.mrf.mxu0
        %v683 = vadd.f32 0.0, %v682
        %v684 = vpop.f32.mrf.mxu0
        %685 = vdwg.mxu0
        %v686 = vsub.f32 %v330, %v608
        %v687 = vsub.f32 %v331, %v613
        %v688 = vsub.f32 %v332, %v618
        %v689 = vsub.f32 %v333, %v623
        %v690 = vsub.f32 %v334, %v628
        %v691 = vsub.f32 %v335, %v633
        %v692 = vsub.f32 %v336, %v638
        %v693 = vsub.f32 %v337, %v643
        %v694 = vsub.f32 %v338, %v648
        %v695 = vsub.f32 %v339, %v653
        %v696 = vsub.f32 %v340, %v658
        %v697 = vsub.f32 %v341, %v663
        %v698 = vsub.f32 %v342, %v668
        %v699 = vsub.f32 %v343, %v673
        %v700 = vsub.f32 %v344, %v678
        %v701 = vsub.f32 %v345, %v683
        %v702 = vstv %s508
        %v703 = vmul.f32 %v702, %v686
        %v704 = vmul.f32 %v702, %v687
        %v705 = vmul.f32 %v702, %v688
        %v706 = vmul.f32 %v702, %v689
        %v707 = vmul.f32 %v702, %v690
        %v708 = vmul.f32 %v702, %v691
        %v709 = vmul.f32 %v702, %v692
        %v710 = vmul.f32 %v702, %v693
        %v711 = vmul.f32 %v702, %v694
        %v712 = vmul.f32 %v702, %v695
        %v713 = vmul.f32 %v702, %v696
        %v714 = vmul.f32 %v702, %v697
        %v715 = vmul.f32 %v702, %v698
        %v716 = vmul.f32 %v702, %v699
        %v717 = vmul.f32 %v702, %v700
        %v718 = vmul.f32 %v702, %v701
        %v719 = vadd.f32 %v330, %v703
        %v720 = vadd.f32 %v331, %v704
        %v721 = vadd.f32 %v332, %v705
        %v722 = vadd.f32 %v333, %v706
        %v723 = vadd.f32 %v334, %v707
        %v724 = vadd.f32 %v335, %v708
        %v725 = vadd.f32 %v336, %v709
        %v726 = vadd.f32 %v337, %v710
        %v727 = vadd.f32 %v338, %v711
        %v728 = vadd.f32 %v339, %v712
        %v729 = vadd.f32 %v340, %v713
        %v730 = vadd.f32 %v341, %v714
        %v731 = vadd.f32 %v342, %v715
        %v732 = vadd.f32 %v343, %v716
        %v733 = vadd.f32 %v344, %v717
        %v734 = vadd.f32 %v345, %v718
        %v735 = vmax.f32 %v719, 0.0
        %v736 = vmax.f32 %v720, 0.0
        %v737 = vmax.f32 %v721, 0.0
        %v738 = vmax.f32 %v722, 0.0
        %v739 = vmax.f32 %v723, 0.0
        %v740 = vmax.f32 %v724, 0.0
        %v741 = vmax.f32 %v725, 0.0
        %v742 = vmax.f32 %v726, 0.0
        %v743 = vmax.f32 %v727, 0.0
        %v744 = vmax.f32 %v728, 0.0
        %v745 = vmax.f32 %v729, 0.0
        %v746 = vmax.f32 %v730, 0.0
        %v747 = vmax.f32 %v731, 0.0
        %v748 = vmax.f32 %v732, 0.0
        %v749 = vmax.f32 %v733, 0.0
        %v750 = vmax.f32 %v734, 0.0
        %v751 = vmin.f32 %v735, 1.0
        %v752 = vmin.f32 %v736, 1.0
        %v753 = vmin.f32 %v737, 1.0
        %v754 = vmin.f32 %v738, 1.0
        %v755 = vmin.f32 %v739, 1.0
        %v756 = vmin.f32 %v740, 1.0
        %v757 = vmin.f32 %v741, 1.0
        %v758 = vmin.f32 %v742, 1.0
        %v759 = vmin.f32 %v743, 1.0
        %v760 = vmin.f32 %v744, 1.0
        %v761 = vmin.f32 %v745, 1.0
        %v762 = vmin.f32 %v746, 1.0
        %v763 = vmin.f32 %v747, 1.0
        %v764 = vmin.f32 %v748, 1.0
        %v765 = vmin.f32 %v749, 1.0
        %v766 = vmin.f32 %v750, 1.0
        %v767 = vmul.f32 %v751, 2.0
        %v768 = vmul.f32 %v752, 2.0
        %v769 = vmul.f32 %v753, 2.0
        %v770 = vmul.f32 %v754, 2.0
        %v771 = vmul.f32 %v755, 2.0
        %v772 = vmul.f32 %v756, 2.0
        %v773 = vmul.f32 %v757, 2.0
        %v774 = vmul.f32 %v758, 2.0
        %v775 = vmul.f32 %v759, 2.0
        %v776 = vmul.f32 %v760, 2.0
        %v777 = vmul.f32 %v761, 2.0
        %v778 = vmul.f32 %v762, 2.0
        %v779 = vmul.f32 %v763, 2.0
        %v780 = vmul.f32 %v764, 2.0
        %v781 = vmul.f32 %v765, 2.0
        %v782 = vmul.f32 %v766, 2.0
        %v783 = vsub.f32 %v767, %v330
        %v784 = vsub.f32 %v768, %v331
        %v785 = vsub.f32 %v769, %v332
        %v786 = vsub.f32 %v770, %v333
        %v787 = vsub.f32 %v771, %v334
        %v788 = vsub.f32 %v772, %v335
        %v789 = vsub.f32 %v773, %v336
        %v790 = vsub.f32 %v774, %v337
        %v791 = vsub.f32 %v775, %v338
        %v792 = vsub.f32 %v776, %v339
        %v793 = vsub.f32 %v777, %v340
        %v794 = vsub.f32 %v778, %v341
        %v795 = vsub.f32 %v779, %v342
        %v796 = vsub.f32 %v780, %v343
        %v797 = vsub.f32 %v781, %v344
        %v798 = vsub.f32 %v782, %v345
        %v799 = vstv %s507
        %v800 = vmul.f32 %v799, %v783
        %v801 = vmul.f32 %v799, %v784
        %v802 = vmul.f32 %v799, %v785
        %v803 = vmul.f32 %v799, %v786
        %v804 = vmul.f32 %v799, %v787
        %v805 = vmul.f32 %v799, %v788
        %v806 = vmul.f32 %v799, %v789
        %v807 = vmul.f32 %v799, %v790
        %v808 = vmul.f32 %v799, %v791
        %v809 = vmul.f32 %v799, %v792
        %v810 = vmul.f32 %v799, %v793
        %v811 = vmul.f32 %v799, %v794
        %v812 = vmul.f32 %v799, %v795
        %v813 = vmul.f32 %v799, %v796
        %v814 = vmul.f32 %v799, %v797
        %v815 = vmul.f32 %v799, %v798
        %816 = vmatprep.subr.mxu0 0.0
        %817 = vmatpush1.msra.mxu0 %v361
        %818 = vmatprep.subr.mxu0 0.0
        %819 = vmatpush1.msra.mxu0 %v360
        %820 = vmatprep.subr.mxu0 0.0
        %821 = vmatpush1.msra.mxu0 %v359
        %822 = vmatprep.subr.mxu0 0.0
        %823 = vmatpush1.msra.mxu0 %v358
        %824 = vmatprep.subr.mxu0 0.0
        %825 = vmatpush1.msra.mxu0 %v357
        %826 = vmatprep.subr.mxu0 0.0
        %827 = vmatpush1.msra.mxu0 %v356
        %828 = vmatprep.subr.mxu0 0.0
        %829 = vmatpush1.msra.mxu0 %v355
        %830 = vmatprep.subr.mxu0 0.0
        %831 = vmatpush1.msra.mxu0 %v354
        %832 = vmatprep.subr.mxu0 0.0
        %833 = vmatpush1.msra.mxu0 %v353
        %834 = vmatprep.subr.mxu0 0.0
        %835 = vmatpush1.msra.mxu0 %v352
        %836 = vmatprep.subr.mxu0 0.0
        %837 = vmatpush1.msra.mxu0 %v351
        %838 = vmatprep.subr.mxu0 0.0
        %839 = vmatpush1.msra.mxu0 %v350
        %840 = vmatprep.subr.mxu0 0.0
        %841 = vmatpush1.msra.mxu0 %v349
        %842 = vmatprep.subr.mxu0 0.0
        %843 = vmatpush1.msra.mxu0 %v348
        %844 = vmatprep.subr.mxu0 0.0
        %845 = vmatpush1.msra.mxu0 %v347
        %846 = vmatprep.subr.mxu0 0.0
        %847 = vmatpush1.msra.mxu0 %v346
        %848 = vmatprep.subr.mxu0 0.0
        %849 = vmatpush2.msra.mxu0 0.0
        %850 = vmatprep.subr.mxu0 0.0
        %851 = vmatpush2.msra.mxu0 0.0
        %852 = vmatprep.subr.mxu0 0.0
        %853 = vmatpush2.msra.mxu0 0.0
        %854 = vmatprep.subr.mxu0 0.0
        %855 = vmatpush2.msra.mxu0 0.0
        %856 = vmatprep.subr.mxu0 0.0
        %857 = vmatpush2.msra.mxu0 0.0
        %858 = vmatprep.subr.mxu0 0.0
        %859 = vmatpush2.msra.mxu0 0.0
        %860 = vmatprep.subr.mxu0 0.0
        %861 = vmatpush2.msra.mxu0 0.0
        %862 = vmatprep.subr.mxu0 0.0
        %863 = vmatpush2.msra.mxu0 0.0
        %864 = vmatprep.subr.mxu0 0.0
        %865 = vmatpush2.msra.mxu0 0.0
        %866 = vmatprep.subr.mxu0 0.0
        %867 = vmatpush2.msra.mxu0 0.0
        %868 = vmatprep.subr.mxu0 0.0
        %869 = vmatpush2.msra.mxu0 0.0
        %870 = vmatprep.subr.mxu0 0.0
        %871 = vmatpush2.msra.mxu0 0.0
        %872 = vmatprep.subr.mxu0 0.0
        %873 = vmatpush2.msra.mxu0 0.0
        %874 = vmatprep.subr.mxu0 0.0
        %875 = vmatpush2.msra.mxu0 0.0
        %876 = vmatprep.subr.mxu0 0.0
        %877 = vmatpush2.msra.mxu0 0.0
        %878 = vmatprep.subr.mxu0 0.0
        %879 = vmatpush2.msra.mxu0 0.0
        %880 = vmatprep.mubr.f32.mxu0 0.0
        %881 = vmatmul.mubr.f32.gmra.mxu0 %v800
        %v882 = vpop.f32.mrf.mxu0
        %v883 = vadd.f32 %v429, %v882
        %v884 = vpop.f32.mrf.mxu0
        %885 = vmatprep.mubr.f32.mxu0 0.0
        %886 = vmatmul.mubr.f32.gmra.mxu0 %v801
        %v887 = vpop.f32.mrf.mxu0
        %v888 = vadd.f32 %v434, %v887
        %v889 = vpop.f32.mrf.mxu0
        %890 = vmatprep.mubr.f32.mxu0 0.0
        %891 = vmatmul.mubr.f32.gmra.mxu0 %v802
        %v892 = vpop.f32.mrf.mxu0
        %v893 = vadd.f32 %v439, %v892
        %v894 = vpop.f32.mrf.mxu0
        %895 = vmatprep.mubr.f32.mxu0 0.0
        %896 = vmatmul.mubr.f32.gmra.mxu0 %v803
        %v897 = vpop.f32.mrf.mxu0
        %v898 = vadd.f32 %v444, %v897
        %v899 = vpop.f32.mrf.mxu0
        %900 = vmatprep.mubr.f32.mxu0 0.0
        %901 = vmatmul.mubr.f32.gmra.mxu0 %v804
        %v902 = vpop.f32.mrf.mxu0
        %v903 = vadd.f32 %v449, %v902
        %v904 = vpop.f32.mrf.mxu0
        %905 = vmatprep.mubr.f32.mxu0 0.0
        %906 = vmatmul.mubr.f32.gmra.mxu0 %v805
        %v907 = vpop.f32.mrf.mxu0
        %v908 = vadd.f32 %v454, %v907
        %v909 = vpop.f32.mrf.mxu0
        %910 = vmatprep.mubr.f32.mxu0 0.0
        %911 = vmatmul.mubr.f32.gmra.mxu0 %v806
        %v912 = vpop.f32.mrf.mxu0
        %v913 = vadd.f32 %v459, %v912
        %v914 = vpop.f32.mrf.mxu0
        %915 = vmatprep.mubr.f32.mxu0 0.0
        %916 = vmatmul.mubr.f32.gmra.mxu0 %v807
        %v917 = vpop.f32.mrf.mxu0
        %v918 = vadd.f32 %v464, %v917
        %v919 = vpop.f32.mrf.mxu0
        %920 = vmatprep.mubr.f32.mxu0 0.0
        %921 = vmatmul.mubr.f32.gmra.mxu0 %v808
        %v922 = vpop.f32.mrf.mxu0
        %v923 = vadd.f32 %v469, %v922
        %v924 = vpop.f32.mrf.mxu0
        %925 = vmatprep.mubr.f32.mxu0 0.0
        %926 = vmatmul.mubr.f32.gmra.mxu0 %v809
        %v927 = vpop.f32.mrf.mxu0
        %v928 = vadd.f32 %v474, %v927
        %v929 = vpop.f32.mrf.mxu0
        %930 = vmatprep.mubr.f32.mxu0 0.0
        %931 = vmatmul.mubr.f32.gmra.mxu0 %v810
        %v932 = vpop.f32.mrf.mxu0
        %v933 = vadd.f32 %v479, %v932
        %v934 = vpop.f32.mrf.mxu0
        %935 = vmatprep.mubr.f32.mxu0 0.0
        %936 = vmatmul.mubr.f32.gmra.mxu0 %v811
        %v937 = vpop.f32.mrf.mxu0
        %v938 = vadd.f32 %v484, %v937
        %v939 = vpop.f32.mrf.mxu0
        %940 = vmatprep.mubr.f32.mxu0 0.0
        %941 = vmatmul.mubr.f32.gmra.mxu0 %v812
        %v942 = vpop.f32.mrf.mxu0
        %v943 = vadd.f32 %v489, %v942
        %v944 = vpop.f32.mrf.mxu0
        %945 = vmatprep.mubr.f32.mxu0 0.0
        %946 = vmatmul.mubr.f32.gmra.mxu0 %v813
        %v947 = vpop.f32.mrf.mxu0
        %v948 = vadd.f32 %v494, %v947
        %v949 = vpop.f32.mrf.mxu0
        %950 = vmatprep.mubr.f32.mxu0 0.0
        %951 = vmatmul.mubr.f32.gmra.mxu0 %v814
        %v952 = vpop.f32.mrf.mxu0
        %v953 = vadd.f32 %v499, %v952
        %v954 = vpop.f32.mrf.mxu0
        %955 = vmatprep.mubr.f32.mxu0 0.0
        %956 = vmatmul.mubr.f32.gmra.mxu0 %v815
        %v957 = vpop.f32.mrf.mxu0
        %v958 = vadd.f32 %v504, %v957
        %v959 = vpop.f32.mrf.mxu0
        %960 = vdwg.mxu0
        %s961 = ssub.f32 0.0, %s329
        %v962 = vstv %s961
        %v963 = vmax.f32 %v962, %v883
        %v964 = vmax.f32 %v962, %v888
        %v965 = vmax.f32 %v962, %v893
        %v966 = vmax.f32 %v962, %v898
        %v967 = vmax.f32 %v962, %v903
        %v968 = vmax.f32 %v962, %v908
        %v969 = vmax.f32 %v962, %v913
        %v970 = vmax.f32 %v962, %v918
        %v971 = vmax.f32 %v962, %v923
        %v972 = vmax.f32 %v962, %v928
        %v973 = vmax.f32 %v962, %v933
        %v974 = vmax.f32 %v962, %v938
        %v975 = vmax.f32 %v962, %v943
        %v976 = vmax.f32 %v962, %v948
        %v977 = vmax.f32 %v962, %v953
        %v978 = vmax.f32 %v962, %v958
        %v979 = vstv %s329
        %v980 = vmin.f32 %v979, %v963
        %v981 = vmin.f32 %v979, %v964
        %v982 = vmin.f32 %v979, %v965
        %v983 = vmin.f32 %v979, %v966
        %v984 = vmin.f32 %v979, %v967
        %v985 = vmin.f32 %v979, %v968
        %v986 = vmin.f32 %v979, %v969
        %v987 = vmin.f32 %v979, %v970
        %v988 = vmin.f32 %v979, %v971
        %v989 = vmin.f32 %v979, %v972
        %v990 = vmin.f32 %v979, %v973
        %v991 = vmin.f32 %v979, %v974
        %v992 = vmin.f32 %v979, %v975
        %v993 = vmin.f32 %v979, %v976
        %v994 = vmin.f32 %v979, %v977
        %v995 = vmin.f32 %v979, %v978
        %s996 = sld [smem:[#allocation3 + $0x1]]
        %s997 = sld [smem:[#allocation7 + $0x1]]
        %998 = vmatprep.subr.mxu0 0.0
        %999 = vmatpush1.msra.mxu0 %v524
        %1000 = vmatprep.subr.mxu0 0.0
        %1001 = vmatpush1.msra.mxu0 %v523
        %1002 = vmatprep.subr.mxu0 0.0
        %1003 = vmatpush1.msra.mxu0 %v522
        %1004 = vmatprep.subr.mxu0 0.0
        %1005 = vmatpush1.msra.mxu0 %v521
        %1006 = vmatprep.subr.mxu0 0.0
        %1007 = vmatpush1.msra.mxu0 %v520
        %1008 = vmatprep.subr.mxu0 0.0
        %1009 = vmatpush1.msra.mxu0 %v519
        %1010 = vmatprep.subr.mxu0 0.0
        %1011 = vmatpush1.msra.mxu0 %v518
        %1012 = vmatprep.subr.mxu0 0.0
        %1013 = vmatpush1.msra.mxu0 %v517
        %1014 = vmatprep.subr.mxu0 0.0
        %1015 = vmatpush1.msra.mxu0 %v516
        %1016 = vmatprep.subr.mxu0 0.0
        %1017 = vmatpush1.msra.mxu0 %v515
        %1018 = vmatprep.subr.mxu0 0.0
        %1019 = vmatpush1.msra.mxu0 %v514
        %1020 = vmatprep.subr.mxu0 0.0
        %1021 = vmatpush1.msra.mxu0 %v513
        %1022 = vmatprep.subr.mxu0 0.0
        %1023 = vmatpush1.msra.mxu0 %v512
        %1024 = vmatprep.subr.mxu0 0.0
        %1025 = vmatpush1.msra.mxu0 %v511
        %1026 = vmatprep.subr.mxu0 0.0
        %1027 = vmatpush1.msra.mxu0 %v510
        %1028 = vmatprep.subr.mxu0 0.0
        %1029 = vmatpush1.msra.mxu0 %v509
        %1030 = vmatprep.subr.mxu0 0.0
        %1031 = vmatpush2.msra.mxu0 %v540
        %1032 = vmatprep.subr.mxu0 0.0
        %1033 = vmatpush2.msra.mxu0 %v539
        %1034 = vmatprep.subr.mxu0 0.0
        %1035 = vmatpush2.msra.mxu0 %v538
        %1036 = vmatprep.subr.mxu0 0.0
        %1037 = vmatpush2.msra.mxu0 %v537
        %1038 = vmatprep.subr.mxu0 0.0
        %1039 = vmatpush2.msra.mxu0 %v536
        %1040 = vmatprep.subr.mxu0 0.0
        %1041 = vmatpush2.msra.mxu0 %v535
        %1042 = vmatprep.subr.mxu0 0.0
        %1043 = vmatpush2.msra.mxu0 %v534
        %1044 = vmatprep.subr.mxu0 0.0
        %1045 = vmatpush2.msra.mxu0 %v533
        %1046 = vmatprep.subr.mxu0 0.0
        %1047 = vmatpush2.msra.mxu0 %v532
        %1048 = vmatprep.subr.mxu0 0.0
        %1049 = vmatpush2.msra.mxu0 %v531
        %1050 = vmatprep.subr.mxu0 0.0
        %1051 = vmatpush2.msra.mxu0 %v530
        %1052 = vmatprep.subr.mxu0 0.0
        %1053 = vmatpush2.msra.mxu0 %v529
        %1054 = vmatprep.subr.mxu0 0.0
        %1055 = vmatpush2.msra.mxu0 %v528
        %1056 = vmatprep.subr.mxu0 0.0
        %1057 = vmatpush2.msra.mxu0 %v527
        %1058 = vmatprep.subr.mxu0 0.0
        %1059 = vmatpush2.msra.mxu0 %v526
        %1060 = vmatprep.subr.mxu0 0.0
        %1061 = vmatpush2.msra.mxu0 %v525
        %1062 = vmatprep.mubr.f32.mxu0 %v980
        %1063 = vmatmul.mubr.f32.gmra.mxu0 %v751
        %v1064 = vpop.f32.mrf.mxu0
        %v1065 = vadd.f32 0.0, %v1064
        %v1066 = vpop.f32.mrf.mxu0
        %1067 = vmatprep.mubr.f32.mxu0 %v981
        %1068 = vmatmul.mubr.f32.gmra.mxu0 %v752
        %v1069 = vpop.f32.mrf.mxu0
        %v1070 = vadd.f32 0.0, %v1069
        %v1071 = vpop.f32.mrf.mxu0
        %1072 = vmatprep.mubr.f32.mxu0 %v982
        %1073 = vmatmul.mubr.f32.gmra.mxu0 %v753
        %v1074 = vpop.f32.mrf.mxu0
        %v1075 = vadd.f32 0.0, %v1074
        %v1076 = vpop.f32.mrf.mxu0
        %1077 = vmatprep.mubr.f32.mxu0 %v983
        %1078 = vmatmul.mubr.f32.gmra.mxu0 %v754
        %v1079 = vpop.f32.mrf.mxu0
        %v1080 = vadd.f32 0.0, %v1079
        %v1081 = vpop.f32.mrf.mxu0
        %1082 = vmatprep.mubr.f32.mxu0 %v984
        %1083 = vmatmul.mubr.f32.gmra.mxu0 %v755
        %v1084 = vpop.f32.mrf.mxu0
        %v1085 = vadd.f32 0.0, %v1084
        %v1086 = vpop.f32.mrf.mxu0
        %1087 = vmatprep.mubr.f32.mxu0 %v985
        %1088 = vmatmul.mubr.f32.gmra.mxu0 %v756
        %v1089 = vpop.f32.mrf.mxu0
        %v1090 = vadd.f32 0.0, %v1089
        %v1091 = vpop.f32.mrf.mxu0
        %1092 = vmatprep.mubr.f32.mxu0 %v986
        %1093 = vmatmul.mubr.f32.gmra.mxu0 %v757
        %v1094 = vpop.f32.mrf.mxu0
        %v1095 = vadd.f32 0.0, %v1094
        %v1096 = vpop.f32.mrf.mxu0
        %1097 = vmatprep.mubr.f32.mxu0 %v987
        %1098 = vmatmul.mubr.f32.gmra.mxu0 %v758
        %v1099 = vpop.f32.mrf.mxu0
        %v1100 = vadd.f32 0.0, %v1099
        %v1101 = vpop.f32.mrf.mxu0
        %1102 = vmatprep.mubr.f32.mxu0 %v988
        %1103 = vmatmul.mubr.f32.gmra.mxu0 %v759
        %v1104 = vpop.f32.mrf.mxu0
        %v1105 = vadd.f32 0.0, %v1104
        %v1106 = vpop.f32.mrf.mxu0
        %1107 = vmatprep.mubr.f32.mxu0 %v989
        %1108 = vmatmul.mubr.f32.gmra.mxu0 %v760
        %v1109 = vpop.f32.mrf.mxu0
        %v1110 = vadd.f32 0.0, %v1109
        %v1111 = vpop.f32.mrf.mxu0
        %1112 = vmatprep.mubr.f32.mxu0 %v990
        %1113 = vmatmul.mubr.f32.gmra.mxu0 %v761
        %v1114 = vpop.f32.mrf.mxu0
        %v1115 = vadd.f32 0.0, %v1114
        %v1116 = vpop.f32.mrf.mxu0
        %1117 = vmatprep.mubr.f32.mxu0 %v991
        %1118 = vmatmul.mubr.f32.gmra.mxu0 %v762
        %v1119 = vpop.f32.mrf.mxu0
        %v1120 = vadd.f32 0.0, %v1119
        %v1121 = vpop.f32.mrf.mxu0
        %1122 = vmatprep.mubr.f32.mxu0 %v992
        %1123 = vmatmul.mubr.f32.gmra.mxu0 %v763
        %v1124 = vpop.f32.mrf.mxu0
        %v1125 = vadd.f32 0.0, %v1124
        %v1126 = vpop.f32.mrf.mxu0
        %1127 = vmatprep.mubr.f32.mxu0 %v993
        %1128 = vmatmul.mubr.f32.gmra.mxu0 %v764
        %v1129 = vpop.f32.mrf.mxu0
        %v1130 = vadd.f32 0.0, %v1129
        %v1131 = vpop.f32.mrf.mxu0
        %1132 = vmatprep.mubr.f32.mxu0 %v994
        %1133 = vmatmul.mubr.f32.gmra.mxu0 %v765
        %v1134 = vpop.f32.mrf.mxu0
        %v1135 = vadd.f32 0.0, %v1134
        %v1136 = vpop.f32.mrf.mxu0
        %1137 = vmatprep.mubr.f32.mxu0 %v995
        %1138 = vmatmul.mubr.f32.gmra.mxu0 %v766
        %v1139 = vpop.f32.mrf.mxu0
        %v1140 = vadd.f32 0.0, %v1139
        %v1141 = vpop.f32.mrf.mxu0
        %1142 = vdwg.mxu0
        %v1143 = vsub.f32 %v330, %v1065
        %v1144 = vsub.f32 %v331, %v1070
        %v1145 = vsub.f32 %v332, %v1075
        %v1146 = vsub.f32 %v333, %v1080
        %v1147 = vsub.f32 %v334, %v1085
        %v1148 = vsub.f32 %v335, %v1090
        %v1149 = vsub.f32 %v336, %v1095
        %v1150 = vsub.f32 %v337, %v1100
        %v1151 = vsub.f32 %v338, %v1105
        %v1152 = vsub.f32 %v339, %v1110
        %v1153 = vsub.f32 %v340, %v1115
        %v1154 = vsub.f32 %v341, %v1120
        %v1155 = vsub.f32 %v342, %v1125
        %v1156 = vsub.f32 %v343, %v1130
        %v1157 = vsub.f32 %v344, %v1135
        %v1158 = vsub.f32 %v345, %v1140
        %v1159 = vstv %s997
        %v1160 = vmul.f32 %v1159, %v1143
        %v1161 = vmul.f32 %v1159, %v1144
        %v1162 = vmul.f32 %v1159, %v1145
        %v1163 = vmul.f32 %v1159, %v1146
        %v1164 = vmul.f32 %v1159, %v1147
        %v1165 = vmul.f32 %v1159, %v1148
        %v1166 = vmul.f32 %v1159, %v1149
        %v1167 = vmul.f32 %v1159, %v1150
        %v1168 = vmul.f32 %v1159, %v1151
        %v1169 = vmul.f32 %v1159, %v1152
        %v1170 = vmul.f32 %v1159, %v1153
        %v1171 = vmul.f32 %v1159, %v1154
        %v1172 = vmul.f32 %v1159, %v1155
        %v1173 = vmul.f32 %v1159, %v1156
        %v1174 = vmul.f32 %v1159, %v1157
        %v1175 = vmul.f32 %v1159, %v1158
        %v1176 = vadd.f32 %v751, %v1160
        %v1177 = vadd.f32 %v752, %v1161
        %v1178 = vadd.f32 %v753, %v1162
        %v1179 = vadd.f32 %v754, %v1163
        %v1180 = vadd.f32 %v755, %v1164
        %v1181 = vadd.f32 %v756, %v1165
        %v1182 = vadd.f32 %v757, %v1166
        %v1183 = vadd.f32 %v758, %v1167
        %v1184 = vadd.f32 %v759, %v1168
        %v1185 = vadd.f32 %v760, %v1169
        %v1186 = vadd.f32 %v761, %v1170
        %v1187 = vadd.f32 %v762, %v1171
        %v1188 = vadd.f32 %v763, %v1172
        %v1189 = vadd.f32 %v764, %v1173
        %v1190 = vadd.f32 %v765, %v1174
        %v1191 = vadd.f32 %v766, %v1175
        %v1192 = vmax.f32 %v1176, 0.0
        %v1193 = vmax.f32 %v1177, 0.0
        %v1194 = vmax.f32 %v1178, 0.0
        %v1195 = vmax.f32 %v1179, 0.0
        %v1196 = vmax.f32 %v1180, 0.0
        %v1197 = vmax.f32 %v1181, 0.0
        %v1198 = vmax.f32 %v1182, 0.0
        %v1199 = vmax.f32 %v1183, 0.0
        %v1200 = vmax.f32 %v1184, 0.0
        %v1201 = vmax.f32 %v1185, 0.0
        %v1202 = vmax.f32 %v1186, 0.0
        %v1203 = vmax.f32 %v1187, 0.0
        %v1204 = vmax.f32 %v1188, 0.0
        %v1205 = vmax.f32 %v1189, 0.0
        %v1206 = vmax.f32 %v1190, 0.0
        %v1207 = vmax.f32 %v1191, 0.0
        %v1208 = vmin.f32 %v1192, 1.0
        %v1209 = vmin.f32 %v1193, 1.0
        %v1210 = vmin.f32 %v1194, 1.0
        %v1211 = vmin.f32 %v1195, 1.0
        %v1212 = vmin.f32 %v1196, 1.0
        %v1213 = vmin.f32 %v1197, 1.0
        %v1214 = vmin.f32 %v1198, 1.0
        %v1215 = vmin.f32 %v1199, 1.0
        %v1216 = vmin.f32 %v1200, 1.0
        %v1217 = vmin.f32 %v1201, 1.0
        %v1218 = vmin.f32 %v1202, 1.0
        %v1219 = vmin.f32 %v1203, 1.0
        %v1220 = vmin.f32 %v1204, 1.0
        %v1221 = vmin.f32 %v1205, 1.0
        %v1222 = vmin.f32 %v1206, 1.0
        %v1223 = vmin.f32 %v1207, 1.0
        %v1224 = vmul.f32 %v1208, 2.0
        %v1225 = vmul.f32 %v1209, 2.0
        %v1226 = vmul.f32 %v1210, 2.0
        %v1227 = vmul.f32 %v1211, 2.0
        %v1228 = vmul.f32 %v1212, 2.0
        %v1229 = vmul.f32 %v1213, 2.0
        %v1230 = vmul.f32 %v1214, 2.0
        %v1231 = vmul.f32 %v1215, 2.0
        %v1232 = vmul.f32 %v1216, 2.0
        %v1233 = vmul.f32 %v1217, 2.0
        %v1234 = vmul.f32 %v1218, 2.0
        %v1235 = vmul.f32 %v1219, 2.0
        %v1236 = vmul.f32 %v1220, 2.0
        %v1237 = vmul.f32 %v1221, 2.0
        %v1238 = vmul.f32 %v1222, 2.0
        %v1239 = vmul.f32 %v1223, 2.0
        %v1240 = vsub.f32 %v1224, %v751
        %v1241 = vsub.f32 %v1225, %v752
        %v1242 = vsub.f32 %v1226, %v753
        %v1243 = vsub.f32 %v1227, %v754
        %v1244 = vsub.f32 %v1228, %v755
        %v1245 = vsub.f32 %v1229, %v756
        %v1246 = vsub.f32 %v1230, %v757
        %v1247 = vsub.f32 %v1231, %v758
        %v1248 = vsub.f32 %v1232, %v759
        %v1249 = vsub.f32 %v1233, %v760
        %v1250 = vsub.f32 %v1234, %v761
        %v1251 = vsub.f32 %v1235, %v762
        %v1252 = vsub.f32 %v1236, %v763
        %v1253 = vsub.f32 %v1237, %v764
        %v1254 = vsub.f32 %v1238, %v765
        %v1255 = vsub.f32 %v1239, %v766
        %v1256 = vstv %s996
        %v1257 = vmul.f32 %v1256, %v1240
        %v1258 = vmul.f32 %v1256, %v1241
        %v1259 = vmul.f32 %v1256, %v1242
        %v1260 = vmul.f32 %v1256, %v1243
        %v1261 = vmul.f32 %v1256, %v1244
        %v1262 = vmul.f32 %v1256, %v1245
        %v1263 = vmul.f32 %v1256, %v1246
        %v1264 = vmul.f32 %v1256, %v1247
        %v1265 = vmul.f32 %v1256, %v1248
        %v1266 = vmul.f32 %v1256, %v1249
        %v1267 = vmul.f32 %v1256, %v1250
        %v1268 = vmul.f32 %v1256, %v1251
        %v1269 = vmul.f32 %v1256, %v1252
        %v1270 = vmul.f32 %v1256, %v1253
        %v1271 = vmul.f32 %v1256, %v1254
        %v1272 = vmul.f32 %v1256, %v1255
        %1273 = vmatprep.subr.mxu0 0.0
        %1274 = vmatpush1.msra.mxu0 %v361
        %1275 = vmatprep.subr.mxu0 0.0
        %1276 = vmatpush1.msra.mxu0 %v360
        %1277 = vmatprep.subr.mxu0 0.0
        %1278 = vmatpush1.msra.mxu0 %v359
        %1279 = vmatprep.subr.mxu0 0.0
        %1280 = vmatpush1.msra.mxu0 %v358
        %1281 = vmatprep.subr.mxu0 0.0
        %1282 = vmatpush1.msra.mxu0 %v357
        %1283 = vmatprep.subr.mxu0 0.0
        %1284 = vmatpush1.msra.mxu0 %v356
        %1285 = vmatprep.subr.mxu0 0.0
        %1286 = vmatpush1.msra.mxu0 %v355
        %1287 = vmatprep.subr.mxu0 0.0
        %1288 = vmatpush1.msra.mxu0 %v354
        %1289 = vmatprep.subr.mxu0 0.0
        %1290 = vmatpush1.msra.mxu0 %v353
        %1291 = vmatprep.subr.mxu0 0.0
        %1292 = vmatpush1.msra.mxu0 %v352
        %1293 = vmatprep.subr.mxu0 0.0
        %1294 = vmatpush1.msra.mxu0 %v351
        %1295 = vmatprep.subr.mxu0 0.0
        %1296 = vmatpush1.msra.mxu0 %v350
        %1297 = vmatprep.subr.mxu0 0.0
        %1298 = vmatpush1.msra.mxu0 %v349
        %1299 = vmatprep.subr.mxu0 0.0
        %1300 = vmatpush1.msra.mxu0 %v348
        %1301 = vmatprep.subr.mxu0 0.0
        %1302 = vmatpush1.msra.mxu0 %v347
        %1303 = vmatprep.subr.mxu0 0.0
        %1304 = vmatpush1.msra.mxu0 %v346
        %1305 = vmatprep.subr.mxu0 0.0
        %1306 = vmatpush2.msra.mxu0 0.0
        %1307 = vmatprep.subr.mxu0 0.0
        %1308 = vmatpush2.msra.mxu0 0.0
        %1309 = vmatprep.subr.mxu0 0.0
        %1310 = vmatpush2.msra.mxu0 0.0
        %1311 = vmatprep.subr.mxu0 0.0
        %1312 = vmatpush2.msra.mxu0 0.0
        %1313 = vmatprep.subr.mxu0 0.0
        %1314 = vmatpush2.msra.mxu0 0.0
        %1315 = vmatprep.subr.mxu0 0.0
        %1316 = vmatpush2.msra.mxu0 0.0
        %1317 = vmatprep.subr.mxu0 0.0
        %1318 = vmatpush2.msra.mxu0 0.0
        %1319 = vmatprep.subr.mxu0 0.0
        %1320 = vmatpush2.msra.mxu0 0.0
        %1321 = vmatprep.subr.mxu0 0.0
        %1322 = vmatpush2.msra.mxu0 0.0
        %1323 = vmatprep.subr.mxu0 0.0
        %1324 = vmatpush2.msra.mxu0 0.0
        %1325 = vmatprep.subr.mxu0 0.0
        %1326 = vmatpush2.msra.mxu0 0.0
        %1327 = vmatprep.subr.mxu0 0.0
        %1328 = vmatpush2.msra.mxu0 0.0
        %1329 = vmatprep.subr.mxu0 0.0
        %1330 = vmatpush2.msra.mxu0 0.0
        %1331 = vmatprep.subr.mxu0 0.0
        %1332 = vmatpush2.msra.mxu0 0.0
        %1333 = vmatprep.subr.mxu0 0.0
        %1334 = vmatpush2.msra.mxu0 0.0
        %1335 = vmatprep.subr.mxu0 0.0
        %1336 = vmatpush2.msra.mxu0 0.0
        %1337 = vmatprep.mubr.f32.mxu0 0.0
        %1338 = vmatmul.mubr.f32.gmra.mxu0 %v1257
        %v1339 = vpop.f32.mrf.mxu0
        %v1340 = vadd.f32 %v980, %v1339
        %v1341 = vpop.f32.mrf.mxu0
        %1342 = vmatprep.mubr.f32.mxu0 0.0
        %1343 = vmatmul.mubr.f32.gmra.mxu0 %v1258
        %v1344 = vpop.f32.mrf.mxu0
        %v1345 = vadd.f32 %v981, %v1344
        %v1346 = vpop.f32.mrf.mxu0
        %1347 = vmatprep.mubr.f32.mxu0 0.0
        %1348 = vmatmul.mubr.f32.gmra.mxu0 %v1259
        %v1349 = vpop.f32.mrf.mxu0
        %v1350 = vadd.f32 %v982, %v1349
        %v1351 = vpop.f32.mrf.mxu0
        %1352 = vmatprep.mubr.f32.mxu0 0.0
        %1353 = vmatmul.mubr.f32.gmra.mxu0 %v1260
        %v1354 = vpop.f32.mrf.mxu0
        %v1355 = vadd.f32 %v983, %v1354
        %v1356 = vpop.f32.mrf.mxu0
        %1357 = vmatprep.mubr.f32.mxu0 0.0
        %1358 = vmatmul.mubr.f32.gmra.mxu0 %v1261
        %v1359 = vpop.f32.mrf.mxu0
        %v1360 = vadd.f32 %v984, %v1359
        %v1361 = vpop.f32.mrf.mxu0
        %1362 = vmatprep.mubr.f32.mxu0 0.0
        %1363 = vmatmul.mubr.f32.gmra.mxu0 %v1262
        %v1364 = vpop.f32.mrf.mxu0
        %v1365 = vadd.f32 %v985, %v1364
        %v1366 = vpop.f32.mrf.mxu0
        %1367 = vmatprep.mubr.f32.mxu0 0.0
        %1368 = vmatmul.mubr.f32.gmra.mxu0 %v1263
        %v1369 = vpop.f32.mrf.mxu0
        %v1370 = vadd.f32 %v986, %v1369
        %v1371 = vpop.f32.mrf.mxu0
        %1372 = vmatprep.mubr.f32.mxu0 0.0
        %1373 = vmatmul.mubr.f32.gmra.mxu0 %v1264
        %v1374 = vpop.f32.mrf.mxu0
        %v1375 = vadd.f32 %v987, %v1374
        %v1376 = vpop.f32.mrf.mxu0
        %1377 = vmatprep.mubr.f32.mxu0 0.0
        %1378 = vmatmul.mubr.f32.gmra.mxu0 %v1265
        %v1379 = vpop.f32.mrf.mxu0
        %v1380 = vadd.f32 %v988, %v1379
        %v1381 = vpop.f32.mrf.mxu0
        %1382 = vmatprep.mubr.f32.mxu0 0.0
        %1383 = vmatmul.mubr.f32.gmra.mxu0 %v1266
        %v1384 = vpop.f32.mrf.mxu0
        %v1385 = vadd.f32 %v989, %v1384
        %v1386 = vpop.f32.mrf.mxu0
        %1387 = vmatprep.mubr.f32.mxu0 0.0
        %1388 = vmatmul.mubr.f32.gmra.mxu0 %v1267
        %v1389 = vpop.f32.mrf.mxu0
        %v1390 = vadd.f32 %v990, %v1389
        %v1391 = vpop.f32.mrf.mxu0
        %1392 = vmatprep.mubr.f32.mxu0 0.0
        %1393 = vmatmul.mubr.f32.gmra.mxu0 %v1268
        %v1394 = vpop.f32.mrf.mxu0
        %v1395 = vadd.f32 %v991, %v1394
        %v1396 = vpop.f32.mrf.mxu0
        %1397 = vmatprep.mubr.f32.mxu0 0.0
        %1398 = vmatmul.mubr.f32.gmra.mxu0 %v1269
        %v1399 = vpop.f32.mrf.mxu0
        %v1400 = vadd.f32 %v992, %v1399
        %v1401 = vpop.f32.mrf.mxu0
        %1402 = vmatprep.mubr.f32.mxu0 0.0
        %1403 = vmatmul.mubr.f32.gmra.mxu0 %v1270
        %v1404 = vpop.f32.mrf.mxu0
        %v1405 = vadd.f32 %v993, %v1404
        %v1406 = vpop.f32.mrf.mxu0
        %1407 = vmatprep.mubr.f32.mxu0 0.0
        %1408 = vmatmul.mubr.f32.gmra.mxu0 %v1271
        %v1409 = vpop.f32.mrf.mxu0
        %v1410 = vadd.f32 %v994, %v1409
        %v1411 = vpop.f32.mrf.mxu0
        %1412 = vmatprep.mubr.f32.mxu0 0.0
        %1413 = vmatmul.mubr.f32.gmra.mxu0 %v1272
        %v1414 = vpop.f32.mrf.mxu0
        %v1415 = vadd.f32 %v995, %v1414
        %v1416 = vpop.f32.mrf.mxu0
        %1417 = vdwg.mxu0
        %v1418 = vmax.f32 %v962, %v1340
        %v1419 = vmax.f32 %v962, %v1345
        %v1420 = vmax.f32 %v962, %v1350
        %v1421 = vmax.f32 %v962, %v1355
        %v1422 = vmax.f32 %v962, %v1360
        %v1423 = vmax.f32 %v962, %v1365
        %v1424 = vmax.f32 %v962, %v1370
        %v1425 = vmax.f32 %v962, %v1375
        %v1426 = vmax.f32 %v962, %v1380
        %v1427 = vmax.f32 %v962, %v1385
        %v1428 = vmax.f32 %v962, %v1390
        %v1429 = vmax.f32 %v962, %v1395
        %v1430 = vmax.f32 %v962, %v1400
        %v1431 = vmax.f32 %v962, %v1405
        %v1432 = vmax.f32 %v962, %v1410
        %v1433 = vmax.f32 %v962, %v1415
        %v1434 = vmin.f32 %v979, %v1418
        %v1435 = vmin.f32 %v979, %v1419
        %v1436 = vmin.f32 %v979, %v1420
        %v1437 = vmin.f32 %v979, %v1421
        %v1438 = vmin.f32 %v979, %v1422
        %v1439 = vmin.f32 %v979, %v1423
        %v1440 = vmin.f32 %v979, %v1424
        %v1441 = vmin.f32 %v979, %v1425
        %v1442 = vmin.f32 %v979, %v1426
        %v1443 = vmin.f32 %v979, %v1427
        %v1444 = vmin.f32 %v979, %v1428
        %v1445 = vmin.f32 %v979, %v1429
        %v1446 = vmin.f32 %v979, %v1430
        %v1447 = vmin.f32 %v979, %v1431
        %v1448 = vmin.f32 %v979, %v1432
        %v1449 = vmin.f32 %v979, %v1433
        %s1450 = sld [smem:[#allocation3 + $0x2]]
        %s1451 = sld [smem:[#allocation7 + $0x2]]
        %1452 = vmatprep.subr.mxu0 0.0
        %1453 = vmatpush1.msra.mxu0 %v524
        %1454 = vmatprep.subr.mxu0 0.0
        %1455 = vmatpush1.msra.mxu0 %v523
        %1456 = vmatprep.subr.mxu0 0.0
        %1457 = vmatpush1.msra.mxu0 %v522
        %1458 = vmatprep.subr.mxu0 0.0
        %1459 = vmatpush1.msra.mxu0 %v521
        %1460 = vmatprep.subr.mxu0 0.0
        %1461 = vmatpush1.msra.mxu0 %v520
        %1462 = vmatprep.subr.mxu0 0.0
        %1463 = vmatpush1.msra.mxu0 %v519
        %1464 = vmatprep.subr.mxu0 0.0
        %1465 = vmatpush1.msra.mxu0 %v518
        %1466 = vmatprep.subr.mxu0 0.0
        %1467 = vmatpush1.msra.mxu0 %v517
        %1468 = vmatprep.subr.mxu0 0.0
        %1469 = vmatpush1.msra.mxu0 %v516
        %1470 = vmatprep.subr.mxu0 0.0
        %1471 = vmatpush1.msra.mxu0 %v515
        %1472 = vmatprep.subr.mxu0 0.0
        %1473 = vmatpush1.msra.mxu0 %v514
        %1474 = vmatprep.subr.mxu0 0.0
        %1475 = vmatpush1.msra.mxu0 %v513
        %1476 = vmatprep.subr.mxu0 0.0
        %1477 = vmatpush1.msra.mxu0 %v512
        %1478 = vmatprep.subr.mxu0 0.0
        %1479 = vmatpush1.msra.mxu0 %v511
        %1480 = vmatprep.subr.mxu0 0.0
        %1481 = vmatpush1.msra.mxu0 %v510
        %1482 = vmatprep.subr.mxu0 0.0
        %1483 = vmatpush1.msra.mxu0 %v509
        %1484 = vmatprep.subr.mxu0 0.0
        %1485 = vmatpush2.msra.mxu0 %v540
        %1486 = vmatprep.subr.mxu0 0.0
        %1487 = vmatpush2.msra.mxu0 %v539
        %1488 = vmatprep.subr.mxu0 0.0
        %1489 = vmatpush2.msra.mxu0 %v538
        %1490 = vmatprep.subr.mxu0 0.0
        %1491 = vmatpush2.msra.mxu0 %v537
        %1492 = vmatprep.subr.mxu0 0.0
        %1493 = vmatpush2.msra.mxu0 %v536
        %1494 = vmatprep.subr.mxu0 0.0
        %1495 = vmatpush2.msra.mxu0 %v535
        %1496 = vmatprep.subr.mxu0 0.0
        %1497 = vmatpush2.msra.mxu0 %v534
        %1498 = vmatprep.subr.mxu0 0.0
        %1499 = vmatpush2.msra.mxu0 %v533
        %1500 = vmatprep.subr.mxu0 0.0
        %1501 = vmatpush2.msra.mxu0 %v532
        %1502 = vmatprep.subr.mxu0 0.0
        %1503 = vmatpush2.msra.mxu0 %v531
        %1504 = vmatprep.subr.mxu0 0.0
        %1505 = vmatpush2.msra.mxu0 %v530
        %1506 = vmatprep.subr.mxu0 0.0
        %1507 = vmatpush2.msra.mxu0 %v529
        %1508 = vmatprep.subr.mxu0 0.0
        %1509 = vmatpush2.msra.mxu0 %v528
        %1510 = vmatprep.subr.mxu0 0.0
        %1511 = vmatpush2.msra.mxu0 %v527
        %1512 = vmatprep.subr.mxu0 0.0
        %1513 = vmatpush2.msra.mxu0 %v526
        %1514 = vmatprep.subr.mxu0 0.0
        %1515 = vmatpush2.msra.mxu0 %v525
        %1516 = vmatprep.mubr.f32.mxu0 %v1434
        %1517 = vmatmul.mubr.f32.gmra.mxu0 %v1208
        %v1518 = vpop.f32.mrf.mxu0
        %v1519 = vadd.f32 0.0, %v1518
        %v1520 = vpop.f32.mrf.mxu0
        %1521 = vmatprep.mubr.f32.mxu0 %v1435
        %1522 = vmatmul.mubr.f32.gmra.mxu0 %v1209
        %v1523 = vpop.f32.mrf.mxu0
        %v1524 = vadd.f32 0.0, %v1523
        %v1525 = vpop.f32.mrf.mxu0
        %1526 = vmatprep.mubr.f32.mxu0 %v1436
        %1527 = vmatmul.mubr.f32.gmra.mxu0 %v1210
        %v1528 = vpop.f32.mrf.mxu0
        %v1529 = vadd.f32 0.0, %v1528
        %v1530 = vpop.f32.mrf.mxu0
        %1531 = vmatprep.mubr.f32.mxu0 %v1437
        %1532 = vmatmul.mubr.f32.gmra.mxu0 %v1211
        %v1533 = vpop.f32.mrf.mxu0
        %v1534 = vadd.f32 0.0, %v1533
        %v1535 = vpop.f32.mrf.mxu0
        %1536 = vmatprep.mubr.f32.mxu0 %v1438
        %1537 = vmatmul.mubr.f32.gmra.mxu0 %v1212
        %v1538 = vpop.f32.mrf.mxu0
        %v1539 = vadd.f32 0.0, %v1538
        %v1540 = vpop.f32.mrf.mxu0
        %1541 = vmatprep.mubr.f32.mxu0 %v1439
        %1542 = vmatmul.mubr.f32.gmra.mxu0 %v1213
        %v1543 = vpop.f32.mrf.mxu0
        %v1544 = vadd.f32 0.0, %v1543
        %v1545 = vpop.f32.mrf.mxu0
        %1546 = vmatprep.mubr.f32.mxu0 %v1440
        %1547 = vmatmul.mubr.f32.gmra.mxu0 %v1214
        %v1548 = vpop.f32.mrf.mxu0
        %v1549 = vadd.f32 0.0, %v1548
        %v1550 = vpop.f32.mrf.mxu0
        %1551 = vmatprep.mubr.f32.mxu0 %v1441
        %1552 = vmatmul.mubr.f32.gmra.mxu0 %v1215
        %v1553 = vpop.f32.mrf.mxu0
        %v1554 = vadd.f32 0.0, %v1553
        %v1555 = vpop.f32.mrf.mxu0
        %1556 = vmatprep.mubr.f32.mxu0 %v1442
        %1557 = vmatmul.mubr.f32.gmra.mxu0 %v1216
        %v1558 = vpop.f32.mrf.mxu0
        %v1559 = vadd.f32 0.0, %v1558
        %v1560 = vpop.f32.mrf.mxu0
        %1561 = vmatprep.mubr.f32.mxu0 %v1443
        %1562 = vmatmul.mubr.f32.gmra.mxu0 %v1217
        %v1563 = vpop.f32.mrf.mxu0
        %v1564 = vadd.f32 0.0, %v1563
        %v1565 = vpop.f32.mrf.mxu0
        %1566 = vmatprep.mubr.f32.mxu0 %v1444
        %1567 = vmatmul.mubr.f32.gmra.mxu0 %v1218
        %v1568 = vpop.f32.mrf.mxu0
        %v1569 = vadd.f32 0.0, %v1568
        %v1570 = vpop.f32.mrf.mxu0
        %1571 = vmatprep.mubr.f32.mxu0 %v1445
        %1572 = vmatmul.mubr.f32.gmra.mxu0 %v1219
        %v1573 = vpop.f32.mrf.mxu0
        %v1574 = vadd.f32 0.0, %v1573
        %v1575 = vpop.f32.mrf.mxu0
        %1576 = vmatprep.mubr.f32.mxu0 %v1446
        %1577 = vmatmul.mubr.f32.gmra.mxu0 %v1220
        %v1578 = vpop.f32.mrf.mxu0
        %v1579 = vadd.f32 0.0, %v1578
        %v1580 = vpop.f32.mrf.mxu0
        %1581 = vmatprep.mubr.f32.mxu0 %v1447
        %1582 = vmatmul.mubr.f32.gmra.mxu0 %v1221
        %v1583 = vpop.f32.mrf.mxu0
        %v1584 = vadd.f32 0.0, %v1583
        %v1585 = vpop.f32.mrf.mxu0
        %1586 = vmatprep.mubr.f32.mxu0 %v1448
        %1587 = vmatmul.mubr.f32.gmra.mxu0 %v1222
        %v1588 = vpop.f32.mrf.mxu0
        %v1589 = vadd.f32 0.0, %v1588
        %v1590 = vpop.f32.mrf.mxu0
        %1591 = vmatprep.mubr.f32.mxu0 %v1449
        %1592 = vmatmul.mubr.f32.gmra.mxu0 %v1223
        %v1593 = vpop.f32.mrf.mxu0
        %v1594 = vadd.f32 0.0, %v1593
        %v1595 = vpop.f32.mrf.mxu0
        %1596 = vdwg.mxu0
        %v1597 = vsub.f32 %v330, %v1519
        %v1598 = vsub.f32 %v331, %v1524
        %v1599 = vsub.f32 %v332, %v1529
        %v1600 = vsub.f32 %v333, %v1534
        %v1601 = vsub.f32 %v334, %v1539
        %v1602 = vsub.f32 %v335, %v1544
        %v1603 = vsub.f32 %v336, %v1549
        %v1604 = vsub.f32 %v337, %v1554
        %v1605 = vsub.f32 %v338, %v1559
        %v1606 = vsub.f32 %v339, %v1564
        %v1607 = vsub.f32 %v340, %v1569
        %v1608 = vsub.f32 %v341, %v1574
        %v1609 = vsub.f32 %v342, %v1579
        %v1610 = vsub.f32 %v343, %v1584
        %v1611 = vsub.f32 %v344, %v1589
        %v1612 = vsub.f32 %v345, %v1594
        %v1613 = vstv %s1451
        %v1614 = vmul.f32 %v1613, %v1597
        %v1615 = vmul.f32 %v1613, %v1598
        %v1616 = vmul.f32 %v1613, %v1599
        %v1617 = vmul.f32 %v1613, %v1600
        %v1618 = vmul.f32 %v1613, %v1601
        %v1619 = vmul.f32 %v1613, %v1602
        %v1620 = vmul.f32 %v1613, %v1603
        %v1621 = vmul.f32 %v1613, %v1604
        %v1622 = vmul.f32 %v1613, %v1605
        %v1623 = vmul.f32 %v1613, %v1606
        %v1624 = vmul.f32 %v1613, %v1607
        %v1625 = vmul.f32 %v1613, %v1608
        %v1626 = vmul.f32 %v1613, %v1609
        %v1627 = vmul.f32 %v1613, %v1610
        %v1628 = vmul.f32 %v1613, %v1611
        %v1629 = vmul.f32 %v1613, %v1612
        %v1630 = vadd.f32 %v1208, %v1614
        %v1631 = vadd.f32 %v1209, %v1615
        %v1632 = vadd.f32 %v1210, %v1616
        %v1633 = vadd.f32 %v1211, %v1617
        %v1634 = vadd.f32 %v1212, %v1618
        %v1635 = vadd.f32 %v1213, %v1619
        %v1636 = vadd.f32 %v1214, %v1620
        %v1637 = vadd.f32 %v1215, %v1621
        %v1638 = vadd.f32 %v1216, %v1622
        %v1639 = vadd.f32 %v1217, %v1623
        %v1640 = vadd.f32 %v1218, %v1624
        %v1641 = vadd.f32 %v1219, %v1625
        %v1642 = vadd.f32 %v1220, %v1626
        %v1643 = vadd.f32 %v1221, %v1627
        %v1644 = vadd.f32 %v1222, %v1628
        %v1645 = vadd.f32 %v1223, %v1629
        %v1646 = vmax.f32 %v1630, 0.0
        %v1647 = vmax.f32 %v1631, 0.0
        %v1648 = vmax.f32 %v1632, 0.0
        %v1649 = vmax.f32 %v1633, 0.0
        %v1650 = vmax.f32 %v1634, 0.0
        %v1651 = vmax.f32 %v1635, 0.0
        %v1652 = vmax.f32 %v1636, 0.0
        %v1653 = vmax.f32 %v1637, 0.0
        %v1654 = vmax.f32 %v1638, 0.0
        %v1655 = vmax.f32 %v1639, 0.0
        %v1656 = vmax.f32 %v1640, 0.0
        %v1657 = vmax.f32 %v1641, 0.0
        %v1658 = vmax.f32 %v1642, 0.0
        %v1659 = vmax.f32 %v1643, 0.0
        %v1660 = vmax.f32 %v1644, 0.0
        %v1661 = vmax.f32 %v1645, 0.0
        %v1662 = vmin.f32 %v1646, 1.0
        %v1663 = vmin.f32 %v1647, 1.0
        %v1664 = vmin.f32 %v1648, 1.0
        %v1665 = vmin.f32 %v1649, 1.0
        %v1666 = vmin.f32 %v1650, 1.0
        %v1667 = vmin.f32 %v1651, 1.0
        %v1668 = vmin.f32 %v1652, 1.0
        %v1669 = vmin.f32 %v1653, 1.0
        %v1670 = vmin.f32 %v1654, 1.0
        %v1671 = vmin.f32 %v1655, 1.0
        %v1672 = vmin.f32 %v1656, 1.0
        %v1673 = vmin.f32 %v1657, 1.0
        %v1674 = vmin.f32 %v1658, 1.0
        %v1675 = vmin.f32 %v1659, 1.0
        %v1676 = vmin.f32 %v1660, 1.0
        %v1677 = vmin.f32 %v1661, 1.0
        %v1678 = vmul.f32 %v1662, 2.0
        %v1679 = vmul.f32 %v1663, 2.0
        %v1680 = vmul.f32 %v1664, 2.0
        %v1681 = vmul.f32 %v1665, 2.0
        %v1682 = vmul.f32 %v1666, 2.0
        %v1683 = vmul.f32 %v1667, 2.0
        %v1684 = vmul.f32 %v1668, 2.0
        %v1685 = vmul.f32 %v1669, 2.0
        %v1686 = vmul.f32 %v1670, 2.0
        %v1687 = vmul.f32 %v1671, 2.0
        %v1688 = vmul.f32 %v1672, 2.0
        %v1689 = vmul.f32 %v1673, 2.0
        %v1690 = vmul.f32 %v1674, 2.0
        %v1691 = vmul.f32 %v1675, 2.0
        %v1692 = vmul.f32 %v1676, 2.0
        %v1693 = vmul.f32 %v1677, 2.0
        %v1694 = vsub.f32 %v1678, %v1208
        %v1695 = vsub.f32 %v1679, %v1209
        %v1696 = vsub.f32 %v1680, %v1210
        %v1697 = vsub.f32 %v1681, %v1211
        %v1698 = vsub.f32 %v1682, %v1212
        %v1699 = vsub.f32 %v1683, %v1213
        %v1700 = vsub.f32 %v1684, %v1214
        %v1701 = vsub.f32 %v1685, %v1215
        %v1702 = vsub.f32 %v1686, %v1216
        %v1703 = vsub.f32 %v1687, %v1217
        %v1704 = vsub.f32 %v1688, %v1218
        %v1705 = vsub.f32 %v1689, %v1219
        %v1706 = vsub.f32 %v1690, %v1220
        %v1707 = vsub.f32 %v1691, %v1221
        %v1708 = vsub.f32 %v1692, %v1222
        %v1709 = vsub.f32 %v1693, %v1223
        %v1710 = vstv %s1450
        %v1711 = vmul.f32 %v1710, %v1694
        %v1712 = vmul.f32 %v1710, %v1695
        %v1713 = vmul.f32 %v1710, %v1696
        %v1714 = vmul.f32 %v1710, %v1697
        %v1715 = vmul.f32 %v1710, %v1698
        %v1716 = vmul.f32 %v1710, %v1699
        %v1717 = vmul.f32 %v1710, %v1700
        %v1718 = vmul.f32 %v1710, %v1701
        %v1719 = vmul.f32 %v1710, %v1702
        %v1720 = vmul.f32 %v1710, %v1703
        %v1721 = vmul.f32 %v1710, %v1704
        %v1722 = vmul.f32 %v1710, %v1705
        %v1723 = vmul.f32 %v1710, %v1706
        %v1724 = vmul.f32 %v1710, %v1707
        %v1725 = vmul.f32 %v1710, %v1708
        %v1726 = vmul.f32 %v1710, %v1709
        %1727 = vmatprep.subr.mxu0 0.0
        %1728 = vmatpush1.msra.mxu0 %v361
        %1729 = vmatprep.subr.mxu0 0.0
        %1730 = vmatpush1.msra.mxu0 %v360
        %1731 = vmatprep.subr.mxu0 0.0
        %1732 = vmatpush1.msra.mxu0 %v359
        %1733 = vmatprep.subr.mxu0 0.0
        %1734 = vmatpush1.msra.mxu0 %v358
        %1735 = vmatprep.subr.mxu0 0.0
        %1736 = vmatpush1.msra.mxu0 %v357
        %1737 = vmatprep.subr.mxu0 0.0
        %1738 = vmatpush1.msra.mxu0 %v356
        %1739 = vmatprep.subr.mxu0 0.0
        %1740 = vmatpush1.msra.mxu0 %v355
        %1741 = vmatprep.subr.mxu0 0.0
        %1742 = vmatpush1.msra.mxu0 %v354
        %1743 = vmatprep.subr.mxu0 0.0
        %1744 = vmatpush1.msra.mxu0 %v353
        %1745 = vmatprep.subr.mxu0 0.0
        %1746 = vmatpush1.msra.mxu0 %v352
        %1747 = vmatprep.subr.mxu0 0.0
        %1748 = vmatpush1.msra.mxu0 %v351
        %1749 = vmatprep.subr.mxu0 0.0
        %1750 = vmatpush1.msra.mxu0 %v350
        %1751 = vmatprep.subr.mxu0 0.0
        %1752 = vmatpush1.msra.mxu0 %v349
        %1753 = vmatprep.subr.mxu0 0.0
        %1754 = vmatpush1.msra.mxu0 %v348
        %1755 = vmatprep.subr.mxu0 0.0
        %1756 = vmatpush1.msra.mxu0 %v347
        %1757 = vmatprep.subr.mxu0 0.0
        %1758 = vmatpush1.msra.mxu0 %v346
        %1759 = vmatprep.subr.mxu0 0.0
        %1760 = vmatpush2.msra.mxu0 0.0
        %1761 = vmatprep.subr.mxu0 0.0
        %1762 = vmatpush2.msra.mxu0 0.0
        %1763 = vmatprep.subr.mxu0 0.0
        %1764 = vmatpush2.msra.mxu0 0.0
        %1765 = vmatprep.subr.mxu0 0.0
        %1766 = vmatpush2.msra.mxu0 0.0
        %1767 = vmatprep.subr.mxu0 0.0
        %1768 = vmatpush2.msra.mxu0 0.0
        %1769 = vmatprep.subr.mxu0 0.0
        %1770 = vmatpush2.msra.mxu0 0.0
        %1771 = vmatprep.subr.mxu0 0.0
        %1772 = vmatpush2.msra.mxu0 0.0
        %1773 = vmatprep.subr.mxu0 0.0
        %1774 = vmatpush2.msra.mxu0 0.0
        %1775 = vmatprep.subr.mxu0 0.0
        %1776 = vmatpush2.msra.mxu0 0.0
        %1777 = vmatprep.subr.mxu0 0.0
        %1778 = vmatpush2.msra.mxu0 0.0
        %1779 = vmatprep.subr.mxu0 0.0
        %1780 = vmatpush2.msra.mxu0 0.0
        %1781 = vmatprep.subr.mxu0 0.0
        %1782 = vmatpush2.msra.mxu0 0.0
        %1783 = vmatprep.subr.mxu0 0.0
        %1784 = vmatpush2.msra.mxu0 0.0
        %1785 = vmatprep.subr.mxu0 0.0
        %1786 = vmatpush2.msra.mxu0 0.0
        %1787 = vmatprep.subr.mxu0 0.0
        %1788 = vmatpush2.msra.mxu0 0.0
        %1789 = vmatprep.subr.mxu0 0.0
        %1790 = vmatpush2.msra.mxu0 0.0
        %1791 = vmatprep.mubr.f32.mxu0 0.0
        %1792 = vmatmul.mubr.f32.gmra.mxu0 %v1711
        %v1793 = vpop.f32.mrf.mxu0
        %v1794 = vadd.f32 %v1434, %v1793
        %v1795 = vpop.f32.mrf.mxu0
        %1796 = vmatprep.mubr.f32.mxu0 0.0
        %1797 = vmatmul.mubr.f32.gmra.mxu0 %v1712
        %v1798 = vpop.f32.mrf.mxu0
        %v1799 = vadd.f32 %v1435, %v1798
        %v1800 = vpop.f32.mrf.mxu0
        %1801 = vmatprep.mubr.f32.mxu0 0.0
        %1802 = vmatmul.mubr.f32.gmra.mxu0 %v1713
        %v1803 = vpop.f32.mrf.mxu0
        %v1804 = vadd.f32 %v1436, %v1803
        %v1805 = vpop.f32.mrf.mxu0
        %1806 = vmatprep.mubr.f32.mxu0 0.0
        %1807 = vmatmul.mubr.f32.gmra.mxu0 %v1714
        %v1808 = vpop.f32.mrf.mxu0
        %v1809 = vadd.f32 %v1437, %v1808
        %v1810 = vpop.f32.mrf.mxu0
        %1811 = vmatprep.mubr.f32.mxu0 0.0
        %1812 = vmatmul.mubr.f32.gmra.mxu0 %v1715
        %v1813 = vpop.f32.mrf.mxu0
        %v1814 = vadd.f32 %v1438, %v1813
        %v1815 = vpop.f32.mrf.mxu0
        %1816 = vmatprep.mubr.f32.mxu0 0.0
        %1817 = vmatmul.mubr.f32.gmra.mxu0 %v1716
        %v1818 = vpop.f32.mrf.mxu0
        %v1819 = vadd.f32 %v1439, %v1818
        %v1820 = vpop.f32.mrf.mxu0
        %1821 = vmatprep.mubr.f32.mxu0 0.0
        %1822 = vmatmul.mubr.f32.gmra.mxu0 %v1717
        %v1823 = vpop.f32.mrf.mxu0
        %v1824 = vadd.f32 %v1440, %v1823
        %v1825 = vpop.f32.mrf.mxu0
        %1826 = vmatprep.mubr.f32.mxu0 0.0
        %1827 = vmatmul.mubr.f32.gmra.mxu0 %v1718
        %v1828 = vpop.f32.mrf.mxu0
        %v1829 = vadd.f32 %v1441, %v1828
        %v1830 = vpop.f32.mrf.mxu0
        %1831 = vmatprep.mubr.f32.mxu0 0.0
        %1832 = vmatmul.mubr.f32.gmra.mxu0 %v1719
        %v1833 = vpop.f32.mrf.mxu0
        %v1834 = vadd.f32 %v1442, %v1833
        %v1835 = vpop.f32.mrf.mxu0
        %1836 = vmatprep.mubr.f32.mxu0 0.0
        %1837 = vmatmul.mubr.f32.gmra.mxu0 %v1720
        %v1838 = vpop.f32.mrf.mxu0
        %v1839 = vadd.f32 %v1443, %v1838
        %v1840 = vpop.f32.mrf.mxu0
        %1841 = vmatprep.mubr.f32.mxu0 0.0
        %1842 = vmatmul.mubr.f32.gmra.mxu0 %v1721
        %v1843 = vpop.f32.mrf.mxu0
        %v1844 = vadd.f32 %v1444, %v1843
        %v1845 = vpop.f32.mrf.mxu0
        %1846 = vmatprep.mubr.f32.mxu0 0.0
        %1847 = vmatmul.mubr.f32.gmra.mxu0 %v1722
        %v1848 = vpop.f32.mrf.mxu0
        %v1849 = vadd.f32 %v1445, %v1848
        %v1850 = vpop.f32.mrf.mxu0
        %1851 = vmatprep.mubr.f32.mxu0 0.0
        %1852 = vmatmul.mubr.f32.gmra.mxu0 %v1723
        %v1853 = vpop.f32.mrf.mxu0
        %v1854 = vadd.f32 %v1446, %v1853
        %v1855 = vpop.f32.mrf.mxu0
        %1856 = vmatprep.mubr.f32.mxu0 0.0
        %1857 = vmatmul.mubr.f32.gmra.mxu0 %v1724
        %v1858 = vpop.f32.mrf.mxu0
        %v1859 = vadd.f32 %v1447, %v1858
        %v1860 = vpop.f32.mrf.mxu0
        %1861 = vmatprep.mubr.f32.mxu0 0.0
        %1862 = vmatmul.mubr.f32.gmra.mxu0 %v1725
        %v1863 = vpop.f32.mrf.mxu0
        %v1864 = vadd.f32 %v1448, %v1863
        %v1865 = vpop.f32.mrf.mxu0
        %1866 = vmatprep.mubr.f32.mxu0 0.0
        %1867 = vmatmul.mubr.f32.gmra.mxu0 %v1726
        %v1868 = vpop.f32.mrf.mxu0
        %v1869 = vadd.f32 %v1449, %v1868
        %v1870 = vpop.f32.mrf.mxu0
        %1871 = vdwg.mxu0
        %v1872 = vmax.f32 %v962, %v1794
        %v1873 = vmax.f32 %v962, %v1799
        %v1874 = vmax.f32 %v962, %v1804
        %v1875 = vmax.f32 %v962, %v1809
        %v1876 = vmax.f32 %v962, %v1814
        %v1877 = vmax.f32 %v962, %v1819
        %v1878 = vmax.f32 %v962, %v1824
        %v1879 = vmax.f32 %v962, %v1829
        %v1880 = vmax.f32 %v962, %v1834
        %v1881 = vmax.f32 %v962, %v1839
        %v1882 = vmax.f32 %v962, %v1844
        %v1883 = vmax.f32 %v962, %v1849
        %v1884 = vmax.f32 %v962, %v1854
        %v1885 = vmax.f32 %v962, %v1859
        %v1886 = vmax.f32 %v962, %v1864
        %v1887 = vmax.f32 %v962, %v1869
        %v1888 = vmin.f32 %v979, %v1872
        %v1889 = vmin.f32 %v979, %v1873
        %v1890 = vmin.f32 %v979, %v1874
        %v1891 = vmin.f32 %v979, %v1875
        %v1892 = vmin.f32 %v979, %v1876
        %v1893 = vmin.f32 %v979, %v1877
        %v1894 = vmin.f32 %v979, %v1878
        %v1895 = vmin.f32 %v979, %v1879
        %v1896 = vmin.f32 %v979, %v1880
        %v1897 = vmin.f32 %v979, %v1881
        %v1898 = vmin.f32 %v979, %v1882
        %v1899 = vmin.f32 %v979, %v1883
        %v1900 = vmin.f32 %v979, %v1884
        %v1901 = vmin.f32 %v979, %v1885
        %v1902 = vmin.f32 %v979, %v1886
        %v1903 = vmin.f32 %v979, %v1887
        %s1904 = sld [smem:[#allocation7 + $0x3]]
        %1905 = vmatprep.subr.mxu0 0.0
        %1906 = vmatpush1.msra.mxu0 %v524
        %1907 = vmatprep.subr.mxu0 0.0
        %1908 = vmatpush1.msra.mxu0 %v523
        %1909 = vmatprep.subr.mxu0 0.0
        %1910 = vmatpush1.msra.mxu0 %v522
        %1911 = vmatprep.subr.mxu0 0.0
        %1912 = vmatpush1.msra.mxu0 %v521
        %1913 = vmatprep.subr.mxu0 0.0
        %1914 = vmatpush1.msra.mxu0 %v520
        %1915 = vmatprep.subr.mxu0 0.0
        %1916 = vmatpush1.msra.mxu0 %v519
        %1917 = vmatprep.subr.mxu0 0.0
        %1918 = vmatpush1.msra.mxu0 %v518
        %1919 = vmatprep.subr.mxu0 0.0
        %1920 = vmatpush1.msra.mxu0 %v517
        %1921 = vmatprep.subr.mxu0 0.0
        %1922 = vmatpush1.msra.mxu0 %v516
        %1923 = vmatprep.subr.mxu0 0.0
        %1924 = vmatpush1.msra.mxu0 %v515
        %1925 = vmatprep.subr.mxu0 0.0
        %1926 = vmatpush1.msra.mxu0 %v514
        %1927 = vmatprep.subr.mxu0 0.0
        %1928 = vmatpush1.msra.mxu0 %v513
        %1929 = vmatprep.subr.mxu0 0.0
        %1930 = vmatpush1.msra.mxu0 %v512
        %1931 = vmatprep.subr.mxu0 0.0
        %1932 = vmatpush1.msra.mxu0 %v511
        %1933 = vmatprep.subr.mxu0 0.0
        %1934 = vmatpush1.msra.mxu0 %v510
        %1935 = vmatprep.subr.mxu0 0.0
        %1936 = vmatpush1.msra.mxu0 %v509
        %1937 = vmatprep.subr.mxu0 0.0
        %1938 = vmatpush2.msra.mxu0 %v540
        %1939 = vmatprep.subr.mxu0 0.0
        %1940 = vmatpush2.msra.mxu0 %v539
        %1941 = vmatprep.subr.mxu0 0.0
        %1942 = vmatpush2.msra.mxu0 %v538
        %1943 = vmatprep.subr.mxu0 0.0
        %1944 = vmatpush2.msra.mxu0 %v537
        %1945 = vmatprep.subr.mxu0 0.0
        %1946 = vmatpush2.msra.mxu0 %v536
        %1947 = vmatprep.subr.mxu0 0.0
        %1948 = vmatpush2.msra.mxu0 %v535
        %1949 = vmatprep.subr.mxu0 0.0
        %1950 = vmatpush2.msra.mxu0 %v534
        %1951 = vmatprep.subr.mxu0 0.0
        %1952 = vmatpush2.msra.mxu0 %v533
        %1953 = vmatprep.subr.mxu0 0.0
        %1954 = vmatpush2.msra.mxu0 %v532
        %1955 = vmatprep.subr.mxu0 0.0
        %1956 = vmatpush2.msra.mxu0 %v531
        %1957 = vmatprep.subr.mxu0 0.0
        %1958 = vmatpush2.msra.mxu0 %v530
        %1959 = vmatprep.subr.mxu0 0.0
        %1960 = vmatpush2.msra.mxu0 %v529
        %1961 = vmatprep.subr.mxu0 0.0
        %1962 = vmatpush2.msra.mxu0 %v528
        %1963 = vmatprep.subr.mxu0 0.0
        %1964 = vmatpush2.msra.mxu0 %v527
        %1965 = vmatprep.subr.mxu0 0.0
        %1966 = vmatpush2.msra.mxu0 %v526
        %1967 = vmatprep.subr.mxu0 0.0
        %1968 = vmatpush2.msra.mxu0 %v525
        %1969 = vmatprep.mubr.f32.mxu0 %v1888
        %1970 = vmatmul.mubr.f32.gmra.mxu0 %v1662
        %v1971 = vpop.f32.mrf.mxu0
        %v1972 = vadd.f32 0.0, %v1971
        %v1973 = vpop.f32.mrf.mxu0
        %1974 = vmatprep.mubr.f32.mxu0 %v1889
        %1975 = vmatmul.mubr.f32.gmra.mxu0 %v1663
        %v1976 = vpop.f32.mrf.mxu0
        %v1977 = vadd.f32 0.0, %v1976
        %v1978 = vpop.f32.mrf.mxu0
        %1979 = vmatprep.mubr.f32.mxu0 %v1890
        %1980 = vmatmul.mubr.f32.gmra.mxu0 %v1664
        %v1981 = vpop.f32.mrf.mxu0
        %v1982 = vadd.f32 0.0, %v1981
        %v1983 = vpop.f32.mrf.mxu0
        %1984 = vmatprep.mubr.f32.mxu0 %v1891
        %1985 = vmatmul.mubr.f32.gmra.mxu0 %v1665
        %v1986 = vpop.f32.mrf.mxu0
        %v1987 = vadd.f32 0.0, %v1986
        %v1988 = vpop.f32.mrf.mxu0
        %1989 = vmatprep.mubr.f32.mxu0 %v1892
        %1990 = vmatmul.mubr.f32.gmra.mxu0 %v1666
        %v1991 = vpop.f32.mrf.mxu0
        %v1992 = vadd.f32 0.0, %v1991
        %v1993 = vpop.f32.mrf.mxu0
        %1994 = vmatprep.mubr.f32.mxu0 %v1893
        %1995 = vmatmul.mubr.f32.gmra.mxu0 %v1667
        %v1996 = vpop.f32.mrf.mxu0
        %v1997 = vadd.f32 0.0, %v1996
        %v1998 = vpop.f32.mrf.mxu0
        %1999 = vmatprep.mubr.f32.mxu0 %v1894
        %2000 = vmatmul.mubr.f32.gmra.mxu0 %v1668
        %v2001 = vpop.f32.mrf.mxu0
        %v2002 = vadd.f32 0.0, %v2001
        %v2003 = vpop.f32.mrf.mxu0
        %2004 = vmatprep.mubr.f32.mxu0 %v1895
        %2005 = vmatmul.mubr.f32.gmra.mxu0 %v1669
        %v2006 = vpop.f32.mrf.mxu0
        %v2007 = vadd.f32 0.0, %v2006
        %v2008 = vpop.f32.mrf.mxu0
        %2009 = vmatprep.mubr.f32.mxu0 %v1896
        %2010 = vmatmul.mubr.f32.gmra.mxu0 %v1670
        %v2011 = vpop.f32.mrf.mxu0
        %v2012 = vadd.f32 0.0, %v2011
        %v2013 = vpop.f32.mrf.mxu0
        %2014 = vmatprep.mubr.f32.mxu0 %v1897
        %2015 = vmatmul.mubr.f32.gmra.mxu0 %v1671
        %v2016 = vpop.f32.mrf.mxu0
        %v2017 = vadd.f32 0.0, %v2016
        %v2018 = vpop.f32.mrf.mxu0
        %2019 = vmatprep.mubr.f32.mxu0 %v1898
        %2020 = vmatmul.mubr.f32.gmra.mxu0 %v1672
        %v2021 = vpop.f32.mrf.mxu0
        %v2022 = vadd.f32 0.0, %v2021
        %v2023 = vpop.f32.mrf.mxu0
        %2024 = vmatprep.mubr.f32.mxu0 %v1899
        %2025 = vmatmul.mubr.f32.gmra.mxu0 %v1673
        %v2026 = vpop.f32.mrf.mxu0
        %v2027 = vadd.f32 0.0, %v2026
        %v2028 = vpop.f32.mrf.mxu0
        %2029 = vmatprep.mubr.f32.mxu0 %v1900
        %2030 = vmatmul.mubr.f32.gmra.mxu0 %v1674
        %v2031 = vpop.f32.mrf.mxu0
        %v2032 = vadd.f32 0.0, %v2031
        %v2033 = vpop.f32.mrf.mxu0
        %2034 = vmatprep.mubr.f32.mxu0 %v1901
        %2035 = vmatmul.mubr.f32.gmra.mxu0 %v1675
        %v2036 = vpop.f32.mrf.mxu0
        %v2037 = vadd.f32 0.0, %v2036
        %v2038 = vpop.f32.mrf.mxu0
        %2039 = vmatprep.mubr.f32.mxu0 %v1902
        %2040 = vmatmul.mubr.f32.gmra.mxu0 %v1676
        %v2041 = vpop.f32.mrf.mxu0
        %v2042 = vadd.f32 0.0, %v2041
        %v2043 = vpop.f32.mrf.mxu0
        %2044 = vmatprep.mubr.f32.mxu0 %v1903
        %2045 = vmatmul.mubr.f32.gmra.mxu0 %v1677
        %v2046 = vpop.f32.mrf.mxu0
        %v2047 = vadd.f32 0.0, %v2046
        %v2048 = vpop.f32.mrf.mxu0
        %2049 = vdwg.mxu0
        %v2050 = vsub.f32 %v330, %v1972
        %v2051 = vsub.f32 %v331, %v1977
        %v2052 = vsub.f32 %v332, %v1982
        %v2053 = vsub.f32 %v333, %v1987
        %v2054 = vsub.f32 %v334, %v1992
        %v2055 = vsub.f32 %v335, %v1997
        %v2056 = vsub.f32 %v336, %v2002
        %v2057 = vsub.f32 %v337, %v2007
        %v2058 = vsub.f32 %v338, %v2012
        %v2059 = vsub.f32 %v339, %v2017
        %v2060 = vsub.f32 %v340, %v2022
        %v2061 = vsub.f32 %v341, %v2027
        %v2062 = vsub.f32 %v342, %v2032
        %v2063 = vsub.f32 %v343, %v2037
        %v2064 = vsub.f32 %v344, %v2042
        %v2065 = vsub.f32 %v345, %v2047
        %v2066 = vstv %s1904
        %v2067 = vmul.f32 %v2066, %v2050
        %v2068 = vmul.f32 %v2066, %v2051
        %v2069 = vmul.f32 %v2066, %v2052
        %v2070 = vmul.f32 %v2066, %v2053
        %v2071 = vmul.f32 %v2066, %v2054
        %v2072 = vmul.f32 %v2066, %v2055
        %v2073 = vmul.f32 %v2066, %v2056
        %v2074 = vmul.f32 %v2066, %v2057
        %v2075 = vmul.f32 %v2066, %v2058
        %v2076 = vmul.f32 %v2066, %v2059
        %v2077 = vmul.f32 %v2066, %v2060
        %v2078 = vmul.f32 %v2066, %v2061
        %v2079 = vmul.f32 %v2066, %v2062
        %v2080 = vmul.f32 %v2066, %v2063
        %v2081 = vmul.f32 %v2066, %v2064
        %v2082 = vmul.f32 %v2066, %v2065
        %v2083 = vadd.f32 %v1662, %v2067
        %v2084 = vadd.f32 %v1663, %v2068
        %v2085 = vadd.f32 %v1664, %v2069
        %v2086 = vadd.f32 %v1665, %v2070
        %v2087 = vadd.f32 %v1666, %v2071
        %v2088 = vadd.f32 %v1667, %v2072
        %v2089 = vadd.f32 %v1668, %v2073
        %v2090 = vadd.f32 %v1669, %v2074
        %v2091 = vadd.f32 %v1670, %v2075
        %v2092 = vadd.f32 %v1671, %v2076
        %v2093 = vadd.f32 %v1672, %v2077
        %v2094 = vadd.f32 %v1673, %v2078
        %v2095 = vadd.f32 %v1674, %v2079
        %v2096 = vadd.f32 %v1675, %v2080
        %v2097 = vadd.f32 %v1676, %v2081
        %v2098 = vadd.f32 %v1677, %v2082
        %v2099 = vmax.f32 %v2083, 0.0
        %v2100 = vmax.f32 %v2084, 0.0
        %v2101 = vmax.f32 %v2085, 0.0
        %v2102 = vmax.f32 %v2086, 0.0
        %v2103 = vmax.f32 %v2087, 0.0
        %v2104 = vmax.f32 %v2088, 0.0
        %v2105 = vmax.f32 %v2089, 0.0
        %v2106 = vmax.f32 %v2090, 0.0
        %v2107 = vmax.f32 %v2091, 0.0
        %v2108 = vmax.f32 %v2092, 0.0
        %v2109 = vmax.f32 %v2093, 0.0
        %v2110 = vmax.f32 %v2094, 0.0
        %v2111 = vmax.f32 %v2095, 0.0
        %v2112 = vmax.f32 %v2096, 0.0
        %v2113 = vmax.f32 %v2097, 0.0
        %v2114 = vmax.f32 %v2098, 0.0
        %v2115 = vmin.f32 %v2099, 1.0
        %v2116 = vmin.f32 %v2100, 1.0
        %v2117 = vmin.f32 %v2101, 1.0
        %v2118 = vmin.f32 %v2102, 1.0
        %v2119 = vmin.f32 %v2103, 1.0
        %v2120 = vmin.f32 %v2104, 1.0
        %v2121 = vmin.f32 %v2105, 1.0
        %v2122 = vmin.f32 %v2106, 1.0
        %v2123 = vmin.f32 %v2107, 1.0
        %v2124 = vmin.f32 %v2108, 1.0
        %v2125 = vmin.f32 %v2109, 1.0
        %v2126 = vmin.f32 %v2110, 1.0
        %v2127 = vmin.f32 %v2111, 1.0
        %v2128 = vmin.f32 %v2112, 1.0
        %v2129 = vmin.f32 %v2113, 1.0
        %v2130 = vmin.f32 %v2114, 1.0
        %2131 = vst [vmem:[%s326] sm:$0xff] %v2115
        %2132 = vst [vmem:[%s326 + $0x8] sm:$0xff] %v2116
        %2133 = vst [vmem:[%s326 + $0x10] sm:$0xff] %v2117
        %2134 = vst [vmem:[%s326 + $0x18] sm:$0xff] %v2118
        %2135 = vst [vmem:[%s326 + $0x20] sm:$0xff] %v2119
        %2136 = vst [vmem:[%s326 + $0x28] sm:$0xff] %v2120
        %2137 = vst [vmem:[%s326 + $0x30] sm:$0xff] %v2121
        %2138 = vst [vmem:[%s326 + $0x38] sm:$0xff] %v2122
        %2139 = vst [vmem:[%s326 + $0x40] sm:$0xff] %v2123
        %2140 = vst [vmem:[%s326 + $0x48] sm:$0xff] %v2124
        %2141 = vst [vmem:[%s326 + $0x50] sm:$0xff] %v2125
        %2142 = vst [vmem:[%s326 + $0x58] sm:$0xff] %v2126
        %2143 = vst [vmem:[%s326 + $0x60] sm:$0xff] %v2127
        %2144 = vst [vmem:[%s326 + $0x68] sm:$0xff] %v2128
        %2145 = vst [vmem:[%s326 + $0x70] sm:$0xff] %v2129
        %2146 = vst [vmem:[%s326 + $0x78] sm:$0xff] %v2130
        %s2147 = sand.u32 %s166, 1
        %s2148 = scalar_lea.sflag [#allocation5], %s2147
        %s2149 = sand.u32 %s166, 1
        %s2150 = smul.addr %s2149, 128
        %s2151 = scalar_lea.vmem [#allocation13], %s2150
        // Predicated region
        $region65: #{tpu_custom_call.1} parent=43 // pred_check
          %p2152 = pneg %p176
        $region66: #{tpu_custom_call.1} parent=43 // pred_check_branch
          %2154 = sbr.rel (%p2152) target = $region68
        $region67: #{tpu_custom_call.1} parent=43 // pred_region
          %s2155 = smul.u32 16, %s27
          %s2157 = ssub.s32 2048, 2048
          %2158 = vsyncadd %s2148, %s2157
          %s2159 = smul.addr %s2155, 128
          %s2160 = scalar_lea.hbm %s6, %s2159
          %s2161 = sshll.u32 %s2151, 4
          %s2162 = int_to_ptr.vmem [resolvable:$true] %s2161
          %2167 = dma.vmem_to_hbm [thread:$0]  %s2162, 2048, %s2160, %s2148, 128, 128, 8
        $region68: #{tpu_custom_call.1} parent=43 // pred_fallthru
          _
      $region44: #{tpu_custom_call.1} parent=5 // pred_fallthru
        _
      %p2168 = scmp.le.s32.totalorder 2, %s22
      // Predicated region
      $region69: #{tpu_custom_call.1} parent=5 // pred_check
        %p2169 = pneg %p2168
      $region70: #{tpu_custom_call.1} parent=5 // pred_check_branch
        %2171 = sbr.rel (%p2169) target = $region72
      $region71: #{tpu_custom_call.1} parent=5 // pred_region
        %s2172 = ssub.s32 %s22, 2
        // Predicated region
        $region73: #{tpu_custom_call.1} parent=71 // pred_check
          %p2173 = pneg %p182
        $region74: #{tpu_custom_call.1} parent=71 // pred_check_branch
          %2175 = sbr.rel (%p2173) target = $region76
        $region75: #{tpu_custom_call.1} parent=71 // pred_region
          %s2176 = sand.u32 %s167, 1
          %s2177 = scalar_lea.sflag [#allocation5], %s2176
          %s2178 = sand.u32 %s167, 1
          %s2179 = smul.addr %s2178, 128
          %s2180 = scalar_lea.vmem [#allocation13], %s2179
          %2181 = dma.done %s2177, 2048
        $region76: #{tpu_custom_call.1} parent=71 // pred_fallthru
          _
      $region72: #{tpu_custom_call.1} parent=5 // pred_fallthru
        _
    $region6: #{tpu_custom_call.1} parent=1 // loop_footer
      %s26 = sadd.s32 1, %s22
    $region7: #{tpu_custom_call.1} parent=1 // loop_footer_branch
      %21 = sbr.rel target = $region3
    $region8: #{tpu_custom_call.1} parent=1 // loop_exit
      _
    %2182 = vsyncpa [#allocation4], 1
    %s2183 = scalar_lea.sflag [#allocation4], 1
    %2184 = vsyncpa %s2183, 1
    %2185 = vsyncpa [#allocation11], 1
    %2186 = vsyncpa [#allocation5], 1
    %s2187 = scalar_lea.sflag [#allocation5], 1
    %2188 = vsyncpa %s2187, 1
    %2189 = vsyncpa [#allocation6], 1
    %s2190 = scalar_lea.sflag [#allocation6], 1
    %2191 = vsyncpa %s2190, 1
    %2192 = vsyncpa [#allocation8], 1

</llo_original>
